<compile_context>
chip_gen: v7x
topology: tpu7x:2x2x1
jax: 0.10.0
libtpu: 0.0.40
codegen_flags: <defaults>
</compile_context>

<pallas_src>
import functools

import jax
import jax.numpy as jnp
from jax import lax
from jax.experimental import pallas as pl
from jax.experimental.pallas import tpu as pltpu

BN_EPS = 1e-5  # PyTorch BatchNorm2d default


# ----------------------------- Pallas kernel ------------------------------ #

def _conv3x3_bn_relu_kernel(x_ref, w_ref, shift_ref, o_ref, *, th, w, kcin, tn):
  """One (row-tile, Cout-tile) step of 3x3 SAME conv + folded BN + ReLU.

  x_ref:     (H+2, W+2, Cin_blk) bf16  spatially padded input, full map per b
  w_ref:     (9*kcin, TN)        bf16  BN-scale-folded weights, K = (kh,kw,ci)
  shift_ref: (1, TN)             f32   folded BN shift (includes conv bias)
  o_ref:     (TH, W, TN)               output tile
  """
  r = pl.program_id(2)
  row0 = pl.multiple_of(r * th, th)
  slab = x_ref[pl.ds(row0, th + 2)]                    # (TH+2, W+2, Cin_blk)

  # In-VMEM im2col: one (TH*W, 9*kcin) LHS -> a single MXU matmul per tile.
  # Only the first `kcin` channels are used (extra lane-pad channels of the
  # inter-conv intermediate are ignored here instead of being sliced in HBM).
  cols = []
  for kh in range(3):
    for kw in range(3):
      cols.append(slab[kh:kh + th, kw:kw + w, :kcin])  # (TH, W, kcin)
  lhs = jnp.concatenate(cols, axis=-1).reshape(th * w, 9 * kcin)

  acc = jnp.dot(lhs, w_ref[...], preferred_element_type=jnp.float32)
  y = jnp.maximum(acc + shift_ref[...], 0.0)           # BN affine + ReLU, f32
  o_ref[...] = y.reshape(th, w, tn).astype(o_ref.dtype)


def _choose_row_tile(h, w):
  """Rows per grid step: target M = th*W in ~256..1024, th | H, never huge."""
  divs = [d for d in range(1, h + 1) if h % d == 0]
  ok = [d for d in divs if 256 <= d * w <= 1024]
  if ok:
    return ok[0]
  under = [d for d in divs if d * w < 256]
  if under:
    return under[-1]
  return 1  # TODO(synk): add a column grid axis when W alone exceeds ~1024.


def _conv3x3_bn_relu(x_padded, w_hwio, scale, shift, *, out_dtype):
  """3x3 SAME conv + folded BatchNorm(eval) + ReLU over NHWC bf16 input.

  x_padded: (B, H+2, W+2, Cin_blk) bf16, already spatially padded. Cin_blk may
            exceed the weights' Cin; extra channels are ignored in-kernel.
  Returns (B, H, W, Cout_pad) in `out_dtype` (Cout padded to a lane multiple).
  """
  B, Hp, Wp, cin_blk = x_padded.shape
  H, W = Hp - 2, Wp - 2
  kcin, cout = w_hwio.shape[2], w_hwio.shape[3]
  cout_pad = ((cout + 127) // 128) * 128
  # 256-wide N tiles fill the v6e/v7x MXU; otherwise 128 (also right for v5e).
  tn = 256 if cout_pad % 256 == 0 else 128

  # Fold BN scale into the conv weights at trace time; K layout = (kh, kw, ci)
  # matches the im2col concat order in the kernel.
  w_k = (w_hwio * scale.reshape(1, 1, 1, cout)).reshape(9 * kcin, cout)
  shift_p = shift
  if cout_pad != cout:
    w_k = jnp.pad(w_k, ((0, 0), (0, cout_pad - cout)))
    shift_p = jnp.pad(shift_p, (0, cout_pad - cout))
  w_k = w_k.astype(jnp.bfloat16)
  shift2 = shift_p.reshape(1, cout_pad).astype(jnp.float32)

  th = _choose_row_tile(H, W)
  grid = (B, cout_pad // tn, H // th)   # row axis innermost: weights DMA'd
                                        # once per (b, cout-tile).

  kernel = functools.partial(_conv3x3_bn_relu_kernel,
                             th=th, w=W, kcin=kcin, tn=tn)
  out_itemsize = jnp.dtype(out_dtype).itemsize
  cost = pl.CostEstimate(
      flops=2 * B * H * W * 9 * kcin * cout_pad,
      transcendentals=0,
      bytes_accessed=(x_padded.size * 2 + w_k.size * 2 + shift2.size * 4
                      + B * H * W * cout_pad * out_itemsize),
  )

  return pl.pallas_call(
      kernel,
      out_shape=jax.ShapeDtypeStruct((B, H, W, cout_pad), out_dtype),
      grid_spec=pltpu.PrefetchScalarGridSpec(
          num_scalar_prefetch=0,
          grid=grid,
          in_specs=[
              # Full padded map per batch element; the index map ignores the
              # (cout, row) axes, so the block is DMA'd once per b and reused
              # across all of that element's tiles.
              pl.BlockSpec((pl.Squeezed(), Hp, Wp, cin_blk),
                           lambda b, n, r: (b, 0, 0, 0)),
              pl.BlockSpec((9 * kcin, tn), lambda b, n, r: (0, n)),
              pl.BlockSpec((1, tn), lambda b, n, r: (0, n)),
          ],
          out_specs=pl.BlockSpec((pl.Squeezed(), th, W, tn),
                                 lambda b, n, r: (b, r, 0, n)),
      ),
      compiler_params=pltpu.CompilerParams(
          dimension_semantics=("parallel", "parallel", "parallel"),
          vmem_limit_bytes=64 * 1024 * 1024),
      cost_estimate=cost,
  )(x_padded, w_k, shift2)


# ----------------------------- Up forward --------------------------------- #

def _fold_bn(bias, gamma, beta, mean, var):
  scale = gamma / jnp.sqrt(var + BN_EPS)
  shift = beta + scale * (bias - mean)
  return scale, shift


def up_forward(params, x1_nchw, x2_nchw):
  """Pallas implementation of Up.forward. Inputs/outputs are NCHW (float32)."""
  # bf16 before upsample/concat/pad halves the wrapper HBM traffic.
  x1 = jnp.transpose(x1_nchw, (0, 2, 3, 1)).astype(jnp.bfloat16)
  x2 = jnp.transpose(x2_nchw, (0, 2, 3, 1)).astype(jnp.bfloat16)

  # nn.Upsample(scale_factor=2), default mode='nearest', then channel concat.
  x1u = jnp.repeat(jnp.repeat(x1, 2, axis=1), 2, axis=2)
  x = jnp.concatenate([x1u, x2], axis=-1)
  xp = jnp.pad(x, ((0, 0), (1, 1), (1, 1), (0, 0)))

  s1, t1 = _fold_bn(params["b1"], params["gamma1"], params["beta1"],
                    params["mean1"], params["var1"])
  y1 = _conv3x3_bn_relu(xp, params["w1"], s1, t1, out_dtype=jnp.bfloat16)

  # Keep the lane-padded bf16 intermediate (no channel slice); conv2 ignores
  # the zero pad channels when building its im2col LHS.
  y1p = jnp.pad(y1, ((0, 0), (1, 1), (1, 1), (0, 0)))

  s2, t2 = _fold_bn(params["b2"], params["gamma2"], params["beta2"],
                    params["mean2"], params["var2"])
  y2 = _conv3x3_bn_relu(y1p, params["w2"], s2, t2, out_dtype=jnp.float32)

  out_c = params["w2"].shape[-1]
  return jnp.transpose(y2[..., :out_c], (0, 3, 1, 2))  # -> NCHW


# ------------------------ pure-JAX reference check ------------------------- #

def _ref_conv_bn_relu(x_nhwc, w_hwio, bias, gamma, beta, mean, var):
  y = lax.conv_general_dilated(
      x_nhwc, w_hwio, window_strides=(1, 1), padding="SAME",
      dimension_numbers=("NHWC", "HWIO", "NHWC"))
  y = y + bias
  y = (y - mean) / jnp.sqrt(var + BN_EPS) * gamma + beta
  return jnp.maximum(y, 0.0)


def up_forward_ref(params, x1_nchw, x2_nchw):
  x1 = jnp.transpose(x1_nchw, (0, 2, 3, 1))
  x2 = jnp.transpose(x2_nchw, (0, 2, 3, 1))
  x1u = jnp.repeat(jnp.repeat(x1, 2, axis=1), 2, axis=2)
  x = jnp.concatenate([x1u, x2], axis=-1)
  y = _ref_conv_bn_relu(x, params["w1"], params["b1"], params["gamma1"],
                        params["beta1"], params["mean1"], params["var1"])
  y = _ref_conv_bn_relu(y, params["w2"], params["b2"], params["gamma2"],
                        params["beta2"], params["mean2"], params["var2"])
  return jnp.transpose(y, (0, 3, 1, 2))


# --------------------------------- main ------------------------------------ #

def _init_params(key, in_channels, out_channels):
  # double_conv(in_channels, out_channels): mid_channels = out_channels
  mid = out_channels
  ks = jax.random.split(key, 8)
  p = {
      # conv weights in HWIO layout (3, 3, Cin, Cout)
      "w1": jax.random.normal(ks[0], (3, 3, in_channels, mid), jnp.float32) * 0.1,
      "b1": jax.random.normal(ks[1], (mid,), jnp.float32) * 0.05,
      "gamma1": 1.0 + 0.1 * jax.random.normal(ks[2], (mid,), jnp.float32),
      "beta1": 0.05 * jax.random.normal(ks[3], (mid,), jnp.float32),
      "mean1": 0.02 * jax.random.normal(ks[4], (mid,), jnp.float32),
      "var1": 1.0 + 0.1 * jax.random.uniform(ks[5], (mid,), jnp.float32),
      "w2": jax.random.normal(ks[6], (3, 3, mid, out_channels), jnp.float32) * 0.1,
      "b2": jax.random.normal(ks[7], (out_channels,), jnp.float32) * 0.05,
      "gamma2": jnp.linspace(0.9, 1.1, out_channels, dtype=jnp.float32),
      "beta2": jnp.linspace(-0.05, 0.05, out_channels, dtype=jnp.float32),
      "mean2": jnp.linspace(-0.02, 0.02, out_channels, dtype=jnp.float32),
      "var2": jnp.linspace(1.0, 1.2, out_channels, dtype=jnp.float32),
  }
  # TODO(synk): BatchNorm is evaluated in inference mode (running stats);
  # PyTorch's train-mode batch statistics are not reproduced here.
  return p


if __name__ == "__main__":
  key = jax.random.PRNGKey(0)
  k_x1, k_x2, k_p = jax.random.split(key, 3)

  B = 2
  C1, C2 = 2, 2               # concat -> in_channels = 4
  H1, W1 = 8, 8               # x1 spatial; upsampled to 16x16
  H2, W2 = 16, 16             # x2 spatial
  in_channels = C1 + C2       # 4
  out_channels = 4

  x1 = jax.random.normal(k_x1, (B, C1, H1, W1), jnp.float32)
  x2 = jax.random.normal(k_x2, (B, C2, H2, W2), jnp.float32)
  params = _init_params(k_p, in_channels, out_channels)

  out = jax.jit(up_forward)(params, x1, x2)
  out = jax.block_until_ready(out)

  ref = up_forward_ref(params, x1, x2)
  assert out.shape == (B, out_channels, H2, W2), out.shape
  # bf16 operands with f32 accumulation -> loosened tolerance vs f32 reference.
  assert jnp.allclose(out, ref, rtol=3e-2, atol=3e-2), (
      float(jnp.max(jnp.abs(out - ref))))

  print("KERNEL_OK")
</pallas_src>

<mosaic_0001>
module attributes {stable_mosaic.version = 11 : i64} {
  func.func @_conv3x3_bn_relu_kernel(%arg0: i32, %arg1: i32, %arg2: i32, %arg3: memref<1x18x18x4xbf16, #tpu.memory_space<vmem>>, %arg4: memref<36x128xbf16, #tpu.memory_space<vmem>>, %arg5: memref<1x128xf32, #tpu.memory_space<vmem>>, %arg6: memref<1x16x16x128xbf16, #tpu.memory_space<vmem>>) attributes {dimension_semantics = [#tpu.dimension_semantics<parallel>, #tpu.dimension_semantics<parallel>, #tpu.dimension_semantics<parallel>], iteration_bounds = array<i64: 2, 1, 1>, scalar_prefetch = 0 : i64, scratch_operands = 0 : i64, tpu.core_type = #tpu.core_type<tc>, window_params = [{transform_indices = @transform_0, window_bounds = array<i64: 1, 18, 18, 4>}, {transform_indices = @transform_1, window_bounds = array<i64: 36, 128>}, {transform_indices = @transform_2, window_bounds = array<i64: 1, 128>}, {transform_indices = @transform_3, window_bounds = array<i64: 1, 16, 16, 128>}]} {
    %c16_i32 = arith.constant 16 : i32
    %0 = arith.muli %arg2, %c16_i32 : i32
    %1 = tpu.assume_multiple %0, 16 : i32
    %c0 = arith.constant 0 : index
    %2 = arith.index_cast %1 : i32 to index
    %c0_0 = arith.constant 0 : index
    %c0_1 = arith.constant 0 : index
    %3 = vector.load %arg3[%c0, %2, %c0_0, %c0_1] : memref<1x18x18x4xbf16, #tpu.memory_space<vmem>>, vector<1x18x18x4xbf16>
    %4 = vector.shape_cast %3 : vector<1x18x18x4xbf16> to vector<18x18x4xbf16>
    %5 = vector.extract_strided_slice %4 {offsets = [0, 0, 0], sizes = [16, 16, 4], strides = [1, 1, 1]} : vector<18x18x4xbf16> to vector<16x16x4xbf16>
    %6 = vector.extract_strided_slice %4 {offsets = [0, 1, 0], sizes = [16, 16, 4], strides = [1, 1, 1]} : vector<18x18x4xbf16> to vector<16x16x4xbf16>
    %7 = vector.extract_strided_slice %4 {offsets = [0, 2, 0], sizes = [16, 16, 4], strides = [1, 1, 1]} : vector<18x18x4xbf16> to vector<16x16x4xbf16>
    %8 = vector.extract_strided_slice %4 {offsets = [1, 0, 0], sizes = [16, 16, 4], strides = [1, 1, 1]} : vector<18x18x4xbf16> to vector<16x16x4xbf16>
    %9 = vector.extract_strided_slice %4 {offsets = [1, 1, 0], sizes = [16, 16, 4], strides = [1, 1, 1]} : vector<18x18x4xbf16> to vector<16x16x4xbf16>
    %10 = vector.extract_strided_slice %4 {offsets = [1, 2, 0], sizes = [16, 16, 4], strides = [1, 1, 1]} : vector<18x18x4xbf16> to vector<16x16x4xbf16>
    %11 = vector.extract_strided_slice %4 {offsets = [2, 0, 0], sizes = [16, 16, 4], strides = [1, 1, 1]} : vector<18x18x4xbf16> to vector<16x16x4xbf16>
    %12 = vector.extract_strided_slice %4 {offsets = [2, 1, 0], sizes = [16, 16, 4], strides = [1, 1, 1]} : vector<18x18x4xbf16> to vector<16x16x4xbf16>
    %13 = vector.extract_strided_slice %4 {offsets = [2, 2, 0], sizes = [16, 16, 4], strides = [1, 1, 1]} : vector<18x18x4xbf16> to vector<16x16x4xbf16>
    %14 = tpu.concatenate %5, %6, %7, %8, %9, %10, %11, %12, %13 in 2 : vector<16x16x4xbf16>, vector<16x16x4xbf16>, vector<16x16x4xbf16>, vector<16x16x4xbf16>, vector<16x16x4xbf16>, vector<16x16x4xbf16>, vector<16x16x4xbf16>, vector<16x16x4xbf16>, vector<16x16x4xbf16> -> vector<16x16x36xbf16>
    %15 = vector.shape_cast %14 : vector<16x16x36xbf16> to vector<256x36xbf16>
    %c0_2 = arith.constant 0 : index
    %c0_3 = arith.constant 0 : index
    %16 = vector.load %arg4[%c0_2, %c0_3] : memref<36x128xbf16, #tpu.memory_space<vmem>>, vector<36x128xbf16>
    %cst = arith.constant dense<0.000000e+00> : vector<256x128xf32>
    %17 = tpu.matmul %15, %16, %cst {dimension_numbers = #tpu.dot_dimension_numbers<[1], [0], [0], [1], [0, 0, 1, 1], [], []>} : vector<256x36xbf16>, vector<36x128xbf16>, vector<256x128xf32> -> vector<256x128xf32>
    %c0_4 = arith.constant 0 : index
    %c0_5 = arith.constant 0 : index
    %18 = vector.load %arg5[%c0_4, %c0_5] : memref<1x128xf32, #tpu.memory_space<vmem>>, vector<1x128xf32>
    %19 = vector.broadcast %18 : vector<1x128xf32> to vector<256x128xf32>
    %20 = arith.addf %17, %19 : vector<256x128xf32>
    %cst_6 = arith.constant 0.000000e+00 : f32
    %21 = vector.broadcast %cst_6 : f32 to vector<256x128xf32>
    %22 = arith.maximumf %20, %21 : vector<256x128xf32>
    %23 = vector.shape_cast %22 : vector<256x128xf32> to vector<16x16x128xf32>
    %24 = arith.truncf %23 : vector<16x16x128xf32> to vector<16x16x128xbf16>
    %c0_7 = arith.constant 0 : index
    %c0_8 = arith.constant 0 : index
    %c0_9 = arith.constant 0 : index
    %c0_10 = arith.constant 0 : index
    %25 = vector.load %arg6[%c0_7, %c0_8, %c0_9, %c0_10] : memref<1x16x16x128xbf16, #tpu.memory_space<vmem>>, vector<1x16x16x128xbf16>
    %26 = vector.shape_cast %25 : vector<1x16x16x128xbf16> to vector<16x16x128xbf16>
    %27 = vector.shape_cast %24 : vector<16x16x128xbf16> to vector<1x16x16x128xbf16>
    tpu.vector_store %arg6[%c0_7, %c0_8, %c0_9, %c0_10], %27 {strides = array<i32>} : memref<1x16x16x128xbf16, #tpu.memory_space<vmem>>, vector<1x16x16x128xbf16>,
    return
  }
  func.func @transform_0(%arg0: i32, %arg1: i32, %arg2: i32) -> (i32, i32, i32, i32) {
    %c0_i32 = arith.constant 0 : i32
    %c0_i32_0 = arith.constant 0 : i32
    %c0_i32_1 = arith.constant 0 : i32
    %c0_i32_2 = arith.constant 0 : i32
    return %arg0, %c0_i32, %c0_i32_0, %c0_i32_1 : i32, i32, i32, i32
  }
  func.func @transform_1(%arg0: i32, %arg1: i32, %arg2: i32) -> (i32, i32) {
    %c0_i32 = arith.constant 0 : i32
    %c0_i32_0 = arith.constant 0 : i32
    return %c0_i32, %arg1 : i32, i32
  }
  func.func @transform_2(%arg0: i32, %arg1: i32, %arg2: i32) -> (i32, i32) {
    %c0_i32 = arith.constant 0 : i32
    %c0_i32_0 = arith.constant 0 : i32
    return %c0_i32, %arg1 : i32, i32
  }
  func.func @transform_3(%arg0: i32, %arg1: i32, %arg2: i32) -> (i32, i32, i32, i32) {
    %c0_i32 = arith.constant 0 : i32
    %c0_i32_0 = arith.constant 0 : i32
    return %arg0, %arg2, %c0_i32, %arg1 : i32, i32, i32, i32
  }
}

module attributes {stable_mosaic.version = 11 : i64} {
  func.func @_conv3x3_bn_relu_kernel(%arg0: i32, %arg1: i32, %arg2: i32, %arg3: memref<1x18x18x128xbf16, #tpu.memory_space<vmem>>, %arg4: memref<36x128xbf16, #tpu.memory_space<vmem>>, %arg5: memref<1x128xf32, #tpu.memory_space<vmem>>, %arg6: memref<1x16x16x128xf32, #tpu.memory_space<vmem>>) attributes {dimension_semantics = [#tpu.dimension_semantics<parallel>, #tpu.dimension_semantics<parallel>, #tpu.dimension_semantics<parallel>], iteration_bounds = array<i64: 2, 1, 1>, scalar_prefetch = 0 : i64, scratch_operands = 0 : i64, tpu.core_type = #tpu.core_type<tc>, window_params = [{transform_indices = @transform_0, window_bounds = array<i64: 1, 18, 18, 128>}, {transform_indices = @transform_1, window_bounds = array<i64: 36, 128>}, {transform_indices = @transform_2, window_bounds = array<i64: 1, 128>}, {transform_indices = @transform_3, window_bounds = array<i64: 1, 16, 16, 128>}]} {
    %c16_i32 = arith.constant 16 : i32
    %0 = arith.muli %arg2, %c16_i32 : i32
    %1 = tpu.assume_multiple %0, 16 : i32
    %c0 = arith.constant 0 : index
    %2 = arith.index_cast %1 : i32 to index
    %c0_0 = arith.constant 0 : index
    %c0_1 = arith.constant 0 : index
    %3 = vector.load %arg3[%c0, %2, %c0_0, %c0_1] : memref<1x18x18x128xbf16, #tpu.memory_space<vmem>>, vector<1x18x18x128xbf16>
    %4 = vector.shape_cast %3 : vector<1x18x18x128xbf16> to vector<18x18x128xbf16>
    %5 = vector.extract_strided_slice %4 {offsets = [0, 0, 0], sizes = [16, 16, 4], strides = [1, 1, 1]} : vector<18x18x128xbf16> to vector<16x16x4xbf16>
    %6 = vector.extract_strided_slice %4 {offsets = [0, 1, 0], sizes = [16, 16, 4], strides = [1, 1, 1]} : vector<18x18x128xbf16> to vector<16x16x4xbf16>
    %7 = vector.extract_strided_slice %4 {offsets = [0, 2, 0], sizes = [16, 16, 4], strides = [1, 1, 1]} : vector<18x18x128xbf16> to vector<16x16x4xbf16>
    %8 = vector.extract_strided_slice %4 {offsets = [1, 0, 0], sizes = [16, 16, 4], strides = [1, 1, 1]} : vector<18x18x128xbf16> to vector<16x16x4xbf16>
    %9 = vector.extract_strided_slice %4 {offsets = [1, 1, 0], sizes = [16, 16, 4], strides = [1, 1, 1]} : vector<18x18x128xbf16> to vector<16x16x4xbf16>
    %10 = vector.extract_strided_slice %4 {offsets = [1, 2, 0], sizes = [16, 16, 4], strides = [1, 1, 1]} : vector<18x18x128xbf16> to vector<16x16x4xbf16>
    %11 = vector.extract_strided_slice %4 {offsets = [2, 0, 0], sizes = [16, 16, 4], strides = [1, 1, 1]} : vector<18x18x128xbf16> to vector<16x16x4xbf16>
    %12 = vector.extract_strided_slice %4 {offsets = [2, 1, 0], sizes = [16, 16, 4], strides = [1, 1, 1]} : vector<18x18x128xbf16> to vector<16x16x4xbf16>
    %13 = vector.extract_strided_slice %4 {offsets = [2, 2, 0], sizes = [16, 16, 4], strides = [1, 1, 1]} : vector<18x18x128xbf16> to vector<16x16x4xbf16>
    %14 = tpu.concatenate %5, %6, %7, %8, %9, %10, %11, %12, %13 in 2 : vector<16x16x4xbf16>, vector<16x16x4xbf16>, vector<16x16x4xbf16>, vector<16x16x4xbf16>, vector<16x16x4xbf16>, vector<16x16x4xbf16>, vector<16x16x4xbf16>, vector<16x16x4xbf16>, vector<16x16x4xbf16> -> vector<16x16x36xbf16>
    %15 = vector.shape_cast %14 : vector<16x16x36xbf16> to vector<256x36xbf16>
    %c0_2 = arith.constant 0 : index
    %c0_3 = arith.constant 0 : index
    %16 = vector.load %arg4[%c0_2, %c0_3] : memref<36x128xbf16, #tpu.memory_space<vmem>>, vector<36x128xbf16>
    %cst = arith.constant dense<0.000000e+00> : vector<256x128xf32>
    %17 = tpu.matmul %15, %16, %cst {dimension_numbers = #tpu.dot_dimension_numbers<[1], [0], [0], [1], [0, 0, 1, 1], [], []>} : vector<256x36xbf16>, vector<36x128xbf16>, vector<256x128xf32> -> vector<256x128xf32>
    %c0_4 = arith.constant 0 : index
    %c0_5 = arith.constant 0 : index
    %18 = vector.load %arg5[%c0_4, %c0_5] : memref<1x128xf32, #tpu.memory_space<vmem>>, vector<1x128xf32>
    %19 = vector.broadcast %18 : vector<1x128xf32> to vector<256x128xf32>
    %20 = arith.addf %17, %19 : vector<256x128xf32>
    %cst_6 = arith.constant 0.000000e+00 : f32
    %21 = vector.broadcast %cst_6 : f32 to vector<256x128xf32>
    %22 = arith.maximumf %20, %21 : vector<256x128xf32>
    %23 = vector.shape_cast %22 : vector<256x128xf32> to vector<16x16x128xf32>
    %c0_7 = arith.constant 0 : index
    %c0_8 = arith.constant 0 : index
    %c0_9 = arith.constant 0 : index
    %c0_10 = arith.constant 0 : index
    %24 = vector.load %arg6[%c0_7, %c0_8, %c0_9, %c0_10] : memref<1x16x16x128xf32, #tpu.memory_space<vmem>>, vector<1x16x16x128xf32>
    %25 = vector.shape_cast %24 : vector<1x16x16x128xf32> to vector<16x16x128xf32>
    %26 = vector.shape_cast %23 : vector<16x16x128xf32> to vector<1x16x16x128xf32>
    tpu.vector_store %arg6[%c0_7, %c0_8, %c0_9, %c0_10], %26 {strides = array<i32>} : memref<1x16x16x128xf32, #tpu.memory_space<vmem>>, vector<1x16x16x128xf32>,
    return
  }
  func.func @transform_0(%arg0: i32, %arg1: i32, %arg2: i32) -> (i32, i32, i32, i32) {
    %c0_i32 = arith.constant 0 : i32
    %c0_i32_0 = arith.constant 0 : i32
    %c0_i32_1 = arith.constant 0 : i32
    %c0_i32_2 = arith.constant 0 : i32
    return %arg0, %c0_i32, %c0_i32_0, %c0_i32_1 : i32, i32, i32, i32
  }
  func.func @transform_1(%arg0: i32, %arg1: i32, %arg2: i32) -> (i32, i32) {
    %c0_i32 = arith.constant 0 : i32
    %c0_i32_0 = arith.constant 0 : i32
    return %c0_i32, %arg1 : i32, i32
  }
  func.func @transform_2(%arg0: i32, %arg1: i32, %arg2: i32) -> (i32, i32) {
    %c0_i32 = arith.constant 0 : i32
    %c0_i32_0 = arith.constant 0 : i32
    return %c0_i32, %arg1 : i32, i32
  }
  func.func @transform_3(%arg0: i32, %arg1: i32, %arg2: i32) -> (i32, i32, i32, i32) {
    %c0_i32 = arith.constant 0 : i32
    %c0_i32_0 = arith.constant 0 : i32
    return %arg0, %arg2, %c0_i32, %arg1 : i32, i32, i32, i32
  }
}

</mosaic_0001>

<llo_original>
// kernel: up_forward.2
$region0: #{up_forward.2}
  #allocation0 [shape = 'u32[]', space=smem, size = 0x4, offset = 0x4, fixed_abs, tag = 'smem constant byte address 0x4 - core index']
  #allocation1 [shape = 'u32[144,128]{1,0:T(1,128)}', space=vmem, size = 0x12000, scoped, tag = 'internal scratch']
  %s0 = inlined_call_operand.hbm [shape: bf16[2,18,18,4], index: 0, kind: input, shape index: {}]
  %s1 = inlined_call_operand.hbm [shape: bf16[36,128], index: 1, kind: input, shape index: {}]
  %s2 = inlined_call_operand.hbm [shape: f32[1,128], index: 2, kind: input, shape index: {}]
  %s3 = inlined_call_operand.hbm [shape: bf16[2,16,16,128], index: 3, kind: output, shape index: {}]
  %s4 = sld [smem:[#allocation0]]
  $region57: #{up_forward.2} parent=0
    _
  %s6 = ssub.s32 1, %s4
  %s7 = scalar_select 0, %s6, %s4
  $region1: #{up_forward.2} parent=0
    #allocation2 [shape = 'u8[221184]{0}', space=vmem, size = 0x36000, scoped, tag = 'input window, operand 0']
    #allocation3 [shape = 's32[2]{0}', space=sflag, size = 0x8, scoped, tag = 'scoped memory for up_forward.2']
    #allocation4 [shape = 's32[2]{0}', space=sflag, size = 0x8, scoped, tag = 'scoped memory for up_forward.2']
    #allocation5 [shape = 'u8[10240]{0}', space=vmem, size = 0x2800, scoped, tag = 'input window, operand 1, single buffered']
    #allocation6 [shape = 's32[1]{0}', space=sflag, size = 0x4, scoped, tag = 'scoped memory for up_forward.2']
    #allocation7 [shape = 'u8[512]{0}', space=vmem, size = 0x400, scoped, tag = 'input window, operand 2, single buffered']
    #allocation8 [shape = 'u8[131072]{0}', space=vmem, size = 0x20000, scoped, tag = 'output window, operand 0']
    %8 = vsyncpa [#allocation3], 0
    %s9 = scalar_lea.sflag [#allocation3], 1
    %10 = vsyncpa %s9, 0
    %11 = vsyncpa [#allocation6], 0
    %12 = vsyncpa [#allocation4], 0
    %s13 = scalar_lea.sflag [#allocation4], 1
    %14 = vsyncpa %s13, 0
    loop: start=0, step=1, limit=4
    $region2: #{up_forward.2} parent=1 // loop_pre_header
      _
    $region3: #{up_forward.2} parent=1 // loop_header
      %s16 = sphi 0, %s20
      %p17 = scmp.ge.s32.totalorder %s16, 4
      %s23 = sphi 0, %s42
      %s24 = sphi 0, %s38
      %s25 = sphi 0, %s34
      %s26 = sphi 0, %s23
      %s27 = sphi 0, %s24
      %s28 = sphi 0, %s25
      %s29 = sphi 0, %s26
      %s30 = sphi 0, %s27
      %s31 = sphi 0, %s28
      %s45 = sphi 0, %s47
      %s48 = sphi 0, %s45
      %s49 = sphi 0, %s48
      %s65 = sphi 0, %s49
      %s71 = sphi 0, %s73
      %s74 = sphi 0, %s71
      %s75 = sphi 0, %s74
      %s91 = sphi 0, %s75
      %s97 = sphi 0, %s99
      %s100 = sphi 0, %s97
      %s101 = sphi 0, %s100
      %s117 = sphi 0, %s101
      %s127 = sphi 0, %s129
      %s130 = sphi 0, %s127
      %s131 = sphi 0, %s130
      %s147 = sphi 0, %s131
    $region4: #{up_forward.2} parent=1 // loop_header_branch
      %19 = sbr.rel (%p17) target = $region8
    $region5: #{up_forward.2} parent=1 // loop_body
      %s21 = ssub.s32 %s16, 1
      %s22 = ssub.s32 %s16, 2
      %s32 = sadd.s32 1, %s25
      %p33 = scmp.ge.s32.totalorder %s32, 1
      %s34 = scalar_select %p33, 0, %s32
      %s35 = sadd.s32 1, %s24
      %s36 = scalar_select %p33, %s35, %s24
      %p37 = scmp.ge.s32.totalorder %s36, 1
      %s38 = scalar_select %p37, 0, %s36
      %s39 = sadd.s32 1, %s23
      %s40 = scalar_select %p37, %s39, %s23
      %p41 = scmp.ge.s32.totalorder %s40, 2
      %s42 = scalar_select %p41, 0, %s40
      %s43 = ssub.s32 %s23, %s42
      %p44 = scmp.eq.s32.totalorder %s43, 0
      %s46 = sadd.s32 %s45, 1
      %s47 = scalar_select %p44, %s45, %s46
      %p50 = pneg %p44
      %p51 = scmp.eq.s32.totalorder %s16, 1
      %p52 = por %p50, %p51
      %p53 = scmp.ne.s32.totalorder %s45, %s48
      %p54 = scmp.eq.s32.totalorder %s16, 0
      %p55 = por %p53, %p54
      %p56 = scmp.ne.s32.totalorder %s45, %s48
      %p57 = scmp.eq.s32.totalorder %s21, 1
      %p58 = por %p56, %p57
      %p59 = scmp.ne.s32.totalorder %s48, %s49
      %p60 = scmp.eq.s32.totalorder %s21, 0
      %p61 = por %p59, %p60
      %p62 = scmp.ne.s32.totalorder %s48, %s49
      %p63 = scmp.eq.s32.totalorder %s22, 1
      %p64 = por %p62, %p63
      %p66 = scmp.ne.s32.totalorder %s49, %s65
      %p67 = scmp.eq.s32.totalorder %s22, 0
      %p68 = por %p66, %p67
      %s69 = ssub.s32 %s24, %s38
      %p70 = scmp.eq.s32.totalorder %s69, 0
      %s72 = sadd.s32 %s71, 1
      %s73 = scalar_select %p70, %s71, %s72
      %p76 = pneg %p70
      %p77 = scmp.eq.s32.totalorder %s16, 1
      %p78 = por %p76, %p77
      %p79 = scmp.ne.s32.totalorder %s71, %s74
      %p80 = scmp.eq.s32.totalorder %s16, 0
      %p81 = por %p79, %p80
      %p82 = scmp.ne.s32.totalorder %s71, %s74
      %p83 = scmp.eq.s32.totalorder %s21, 1
      %p84 = por %p82, %p83
      %p85 = scmp.ne.s32.totalorder %s74, %s75
      %p86 = scmp.eq.s32.totalorder %s21, 0
      %p87 = por %p85, %p86
      %p88 = scmp.ne.s32.totalorder %s74, %s75
      %p89 = scmp.eq.s32.totalorder %s22, 1
      %p90 = por %p88, %p89
      %p92 = scmp.ne.s32.totalorder %s75, %s91
      %p93 = scmp.eq.s32.totalorder %s22, 0
      %p94 = por %p92, %p93
      %s95 = ssub.s32 %s24, %s38
      %p96 = scmp.eq.s32.totalorder %s95, 0
      %s98 = sadd.s32 %s97, 1
      %s99 = scalar_select %p96, %s97, %s98
      %p102 = pneg %p96
      %p103 = scmp.eq.s32.totalorder %s16, 1
      %p104 = por %p102, %p103
      %p105 = scmp.ne.s32.totalorder %s97, %s100
      %p106 = scmp.eq.s32.totalorder %s16, 0
      %p107 = por %p105, %p106
      %p108 = scmp.ne.s32.totalorder %s97, %s100
      %p109 = scmp.eq.s32.totalorder %s21, 1
      %p110 = por %p108, %p109
      %p111 = scmp.ne.s32.totalorder %s100, %s101
      %p112 = scmp.eq.s32.totalorder %s21, 0
      %p113 = por %p111, %p112
      %p114 = scmp.ne.s32.totalorder %s100, %s101
      %p115 = scmp.eq.s32.totalorder %s22, 1
      %p116 = por %p114, %p115
      %p118 = scmp.ne.s32.totalorder %s101, %s117
      %p119 = scmp.eq.s32.totalorder %s22, 0
      %p120 = por %p118, %p119
      %s121 = ssub.s32 %s23, %s42
      %s122 = ssub.s32 %s25, %s34
      %s123 = sor.u32 %s121, %s122
      %s124 = ssub.s32 %s24, %s38
      %s125 = sor.u32 %s123, %s124
      %p126 = scmp.eq.s32.totalorder %s125, 0
      %s128 = sadd.s32 %s127, 1
      %s129 = scalar_select %p126, %s127, %s128
      %p132 = pneg %p126
      %p133 = scmp.eq.s32.totalorder %s16, 1
      %p134 = por %p132, %p133
      %p135 = scmp.ne.s32.totalorder %s127, %s130
      %p136 = scmp.eq.s32.totalorder %s16, 0
      %p137 = por %p135, %p136
      %p138 = scmp.ne.s32.totalorder %s127, %s130
      %p139 = scmp.eq.s32.totalorder %s21, 1
      %p140 = por %p138, %p139
      %p141 = scmp.ne.s32.totalorder %s130, %s131
      %p142 = scmp.eq.s32.totalorder %s21, 0
      %p143 = por %p141, %p142
      %p144 = scmp.ne.s32.totalorder %s130, %s131
      %p145 = scmp.eq.s32.totalorder %s22, 1
      %p146 = por %p144, %p145
      %p148 = scmp.ne.s32.totalorder %s131, %s147
      %p149 = scmp.eq.s32.totalorder %s22, 0
      %p150 = por %p148, %p149
      %p151 = scmp.le.s32.totalorder 1, %s16
      %p152 = scmp.lt.s32.totalorder %s16, 3
      %p153 = pnand %p151, %p152
      %p154 = pneg %p153
      // Predicated region
      $region9: #{up_forward.2} parent=5 // pred_check
        _
      $region10: #{up_forward.2} parent=5 // pred_check_branch
        %156 = sbr.rel (%p153) target = $region12
      $region11: #{up_forward.2} parent=5 // pred_region
        %s157 = ssub.s32 %s16, 1
        // Predicated region
        $region13: #{up_forward.2} parent=11 // pred_check
          %p158 = pneg %p87
        $region14: #{up_forward.2} parent=11 // pred_check_branch
          %160 = sbr.rel (%p158) target = $region16
        $region15: #{up_forward.2} parent=11 // pred_region
          %s162 = ssub.s32 320, 320
          %163 = vsyncadd [#allocation6], %s162
          %s164 = smul.addr %s27, 64
          %s165 = scalar_lea.hbm %s1, %s164
          %s166 = sshll.u32 [#allocation5], 4
          %s167 = int_to_ptr.vmem [resolvable:$true] %s166
          %172 = dma.hbm_to_vmem [thread:$0]  %s165, 320, %s167, [#allocation6], 64, 64, 4
        $region16: #{up_forward.2} parent=11 // pred_fallthru
          _
        // Predicated region
        $region17: #{up_forward.2} parent=11 // pred_check
          %p173 = pneg %p113
        $region18: #{up_forward.2} parent=11 // pred_check_branch
          %175 = sbr.rel (%p173) target = $region20
        $region19: #{up_forward.2} parent=11 // pred_region
          %s177 = ssub.s32 16, 16
          %178 = vsyncadd [#allocation6], %s177
          %s179 = smul.addr %s27, 16
          %s180 = scalar_lea.hbm %s2, %s179
          %s182 = sshll.u32 [#allocation7], 4
          %s183 = int_to_ptr.vmem [resolvable:$true] %s182
          %185 = dma.hbm_to_vmem [thread:$0]  %s180, 16, %s183, [#allocation6]
        $region20: #{up_forward.2} parent=11 // pred_fallthru
          _
      $region12: #{up_forward.2} parent=5 // pred_fallthru
        _
      %p186 = scmp.lt.s32.totalorder %s16, 2
      // Predicated region
      $region21: #{up_forward.2} parent=5 // pred_check
        %p187 = pneg %p186
      $region22: #{up_forward.2} parent=5 // pred_check_branch
        %189 = sbr.rel (%p187) target = $region24
      $region23: #{up_forward.2} parent=5 // pred_region
        // Predicated region
        $region25: #{up_forward.2} parent=23 // pred_check
          %p190 = pneg %p55
        $region26: #{up_forward.2} parent=23 // pred_check_branch
          %192 = sbr.rel (%p190) target = $region28
        $region27: #{up_forward.2} parent=23 // pred_region
          %s193 = sand.u32 %s45, 1
          %s194 = scalar_lea.sflag [#allocation3], %s193
          %s195 = sand.u32 %s45, 1
          %s196 = smul.addr %s195, 216
          %s197 = scalar_lea.vmem [#allocation2], %s196
          %s199 = ssub.s32 3456, 3456
          %200 = vsyncadd %s194, %s199
          %s201 = smul.addr %s23, 54
          %s202 = smul.addr %s201, 64
          %s203 = scalar_lea.hbm %s0, %s202
          %s204 = sshll.u32 %s197, 4
          %s205 = int_to_ptr.vmem [resolvable:$true] %s204
          %210 = dma.hbm_to_vmem [thread:$0]  %s203, 3456, %s205, %s194, 64, 64, 4
        $region28: #{up_forward.2} parent=23 // pred_fallthru
          _
      $region24: #{up_forward.2} parent=5 // pred_fallthru
        _
      %p211 = scmp.le.s32.totalorder 1, %s16
      %p212 = scmp.lt.s32.totalorder %s16, 3
      %p213 = pnand %p211, %p212
      %p214 = pneg %p213
      // Predicated region
      $region29: #{up_forward.2} parent=5 // pred_check
        _
      $region30: #{up_forward.2} parent=5 // pred_check_branch
        %216 = sbr.rel (%p213) target = $region32
      $region31: #{up_forward.2} parent=5 // pred_region
        %s217 = ssub.s32 %s16, 1
        %s218 = sand.u32 %s48, 1
        %s219 = scalar_lea.sflag [#allocation3], %s218
        %s220 = sand.u32 %s48, 1
        %s221 = smul.addr %s220, 216
        %s222 = scalar_lea.vmem [#allocation2], %s221
        // Predicated region
        $region33: #{up_forward.2} parent=31 // pred_check
          %p223 = pneg %p61
        $region34: #{up_forward.2} parent=31 // pred_check_branch
          %225 = sbr.rel (%p223) target = $region36
        $region35: #{up_forward.2} parent=31 // pred_region
          %226 = dma.done %s219, 3456
        $region36: #{up_forward.2} parent=31 // pred_fallthru
          _
        // Predicated region
        $region37: #{up_forward.2} parent=31 // pred_check
          %p227 = pneg %p87
        $region38: #{up_forward.2} parent=31 // pred_check_branch
          %229 = sbr.rel (%p227) target = $region40
        $region39: #{up_forward.2} parent=31 // pred_region
          %230 = dma.done [#allocation6], 320
        $region40: #{up_forward.2} parent=31 // pred_fallthru
          _
        // Predicated region
        $region41: #{up_forward.2} parent=31 // pred_check
          %p231 = pneg %p113
        $region42: #{up_forward.2} parent=31 // pred_check_branch
          %233 = sbr.rel (%p231) target = $region44
        $region43: #{up_forward.2} parent=31 // pred_region
          %234 = dma.done [#allocation6], 16
        $region44: #{up_forward.2} parent=31 // pred_fallthru
          _
        %s235 = sand.u32 %s48, 1
        %s236 = scalar_lea.sflag [#allocation3], %s235
        %s237 = sand.u32 %s48, 1
        %s238 = smul.addr %s237, 216
        %s239 = scalar_lea.vmem [#allocation2], %s238
        %p240 = pneg %p61
        %p241 = pneg %p58
        %p242 = pneg %p87
        %p243 = pneg %p84
        %p244 = pneg %p113
        %p245 = pneg %p110
        %p246 = pneg %p143
        %p247 = pneg %p140
        %s248 = sand.u32 %s130, 1
        %s249 = scalar_lea.sflag [#allocation4], %s248
        %s250 = sand.u32 %s130, 1
        %s251 = smul.addr %s250, 128
        %s252 = scalar_lea.vmem [#allocation8], %s251
        %s253 = smul.u32 16, %s28
        %s255 = smul.u32 %s28, 16
        %s256 = smul.u32 %s255, 3
        %s257 = smul.addr %s256, 4
        %s258 = scalar_lea.vmem %s222, %s257 [#allocation2]
        %v259 = vld [vmem:[%s258] sm:$0xf]
        %v260 = vld [vmem:[%s258 + $0x4] sm:$0xf]
        %v261 = vld [vmem:[%s258 + $0x8] sm:$0x1]
        %v262 = vld [vmem:[%s258 + $0xc] sm:$0xf]
        %v263 = vld [vmem:[%s258 + $0x10] sm:$0xf]
        %v264 = vld [vmem:[%s258 + $0x14] sm:$0x1]
        %v265 = vld [vmem:[%s258 + $0x18] sm:$0xf]
        %v266 = vld [vmem:[%s258 + $0x1c] sm:$0xf]
        %v267 = vld [vmem:[%s258 + $0x20] sm:$0x1]
        %v268 = vld [vmem:[%s258 + $0x24] sm:$0xf]
        %v269 = vld [vmem:[%s258 + $0x28] sm:$0xf]
        %v270 = vld [vmem:[%s258 + $0x2c] sm:$0x1]
        %v271 = vld [vmem:[%s258 + $0x30] sm:$0xf]
        %v272 = vld [vmem:[%s258 + $0x34] sm:$0xf]
        %v273 = vld [vmem:[%s258 + $0x38] sm:$0x1]
        %v274 = vld [vmem:[%s258 + $0x3c] sm:$0xf]
        %v275 = vld [vmem:[%s258 + $0x40] sm:$0xf]
        %v276 = vld [vmem:[%s258 + $0x44] sm:$0x1]
        %v277 = vld [vmem:[%s258 + $0x48] sm:$0xf]
        %v278 = vld [vmem:[%s258 + $0x4c] sm:$0xf]
        %v279 = vld [vmem:[%s258 + $0x50] sm:$0x1]
        %v280 = vld [vmem:[%s258 + $0x54] sm:$0xf]
        %v281 = vld [vmem:[%s258 + $0x58] sm:$0xf]
        %v282 = vld [vmem:[%s258 + $0x5c] sm:$0x1]
        %v283 = vld [vmem:[%s258 + $0x60] sm:$0xf]
        %v284 = vld [vmem:[%s258 + $0x64] sm:$0xf]
        %v285 = vld [vmem:[%s258 + $0x68] sm:$0x1]
        %v286 = vld [vmem:[%s258 + $0x6c] sm:$0xf]
        %v287 = vld [vmem:[%s258 + $0x70] sm:$0xf]
        %v288 = vld [vmem:[%s258 + $0x74] sm:$0x1]
        %v289 = vld [vmem:[%s258 + $0x78] sm:$0xf]
        %v290 = vld [vmem:[%s258 + $0x7c] sm:$0xf]
        %v291 = vld [vmem:[%s258 + $0x80] sm:$0x1]
        %v292 = vld [vmem:[%s258 + $0x84] sm:$0xf]
        %v293 = vld [vmem:[%s258 + $0x88] sm:$0xf]
        %v294 = vld [vmem:[%s258 + $0x8c] sm:$0x1]
        %v295 = vld [vmem:[%s258 + $0x90] sm:$0xf]
        %v296 = vld [vmem:[%s258 + $0x94] sm:$0xf]
        %v297 = vld [vmem:[%s258 + $0x98] sm:$0x1]
        %v298 = vld [vmem:[%s258 + $0x9c] sm:$0xf]
        %v299 = vld [vmem:[%s258 + $0xa0] sm:$0xf]
        %v300 = vld [vmem:[%s258 + $0xa4] sm:$0x1]
        %v301 = vld [vmem:[%s258 + $0xa8] sm:$0xf]
        %v302 = vld [vmem:[%s258 + $0xac] sm:$0xf]
        %v303 = vld [vmem:[%s258 + $0xb0] sm:$0x1]
        %v304 = vld [vmem:[%s258 + $0xb4] sm:$0xf]
        %v305 = vld [vmem:[%s258 + $0xb8] sm:$0xf]
        %v306 = vld [vmem:[%s258 + $0xbc] sm:$0x1]
        %v307 = vld [vmem:[%s258 + $0xc0] sm:$0xf]
        %v308 = vld [vmem:[%s258 + $0xc4] sm:$0xf]
        %v309 = vld [vmem:[%s258 + $0xc8] sm:$0x1]
        %v310 = vld [vmem:[%s258 + $0xcc] sm:$0xf]
        %v311 = vld [vmem:[%s258 + $0xd0] sm:$0xf]
        %v312 = vld [vmem:[%s258 + $0xd4] sm:$0x1]
        %v345 = vunpack.c.l.b16 %v259
        %v346 = vunpack.c.l.b16 %v260
        %v347 = vunpack.c.l.b16 %v262
        %v348 = vunpack.c.l.b16 %v263
        %v349 = vunpack.c.l.b16 %v265
        %v350 = vunpack.c.l.b16 %v266
        %v351 = vunpack.c.l.b16 %v268
        %v352 = vunpack.c.l.b16 %v269
        %v353 = vunpack.c.l.b16 %v271
        %v354 = vunpack.c.l.b16 %v272
        %v355 = vunpack.c.l.b16 %v274
        %v356 = vunpack.c.l.b16 %v275
        %v357 = vunpack.c.l.b16 %v277
        %v358 = vunpack.c.l.b16 %v278
        %v359 = vunpack.c.l.b16 %v280
        %v360 = vunpack.c.l.b16 %v281
        %v361 = vunpack.c.l.b16 %v283
        %v362 = vunpack.c.l.b16 %v284
        %v363 = vunpack.c.l.b16 %v286
        %v364 = vunpack.c.l.b16 %v287
        %v365 = vunpack.c.l.b16 %v289
        %v366 = vunpack.c.l.b16 %v290
        %v367 = vunpack.c.l.b16 %v292
        %v368 = vunpack.c.l.b16 %v293
        %v369 = vunpack.c.l.b16 %v295
        %v370 = vunpack.c.l.b16 %v296
        %v371 = vunpack.c.l.b16 %v298
        %v372 = vunpack.c.l.b16 %v299
        %v373 = vunpack.c.l.b16 %v301
        %v374 = vunpack.c.l.b16 %v302
        %v375 = vunpack.c.l.b16 %v304
        %v376 = vunpack.c.l.b16 %v305
        %v377 = vpack.c.b16 %v346, %v345
        %v378 = vpack.c.b16 %v348, %v347
        %v379 = vpack.c.b16 %v350, %v349
        %v380 = vpack.c.b16 %v352, %v351
        %v381 = vpack.c.b16 %v354, %v353
        %v382 = vpack.c.b16 %v356, %v355
        %v383 = vpack.c.b16 %v358, %v357
        %v384 = vpack.c.b16 %v360, %v359
        %v385 = vpack.c.b16 %v362, %v361
        %v386 = vpack.c.b16 %v364, %v363
        %v387 = vpack.c.b16 %v366, %v365
        %v388 = vpack.c.b16 %v368, %v367
        %v389 = vpack.c.b16 %v370, %v369
        %v390 = vpack.c.b16 %v372, %v371
        %v391 = vpack.c.b16 %v374, %v373
        %v392 = vpack.c.b16 %v376, %v375
        %v409 = vunpack.c.l.b16 %v261
        %v410 = vunpack.c.l.b16 %v264
        %v411 = vunpack.c.l.b16 %v267
        %v412 = vunpack.c.l.b16 %v270
        %v413 = vunpack.c.l.b16 %v273
        %v414 = vunpack.c.l.b16 %v276
        %v415 = vunpack.c.l.b16 %v279
        %v416 = vunpack.c.l.b16 %v282
        %v417 = vunpack.c.l.b16 %v285
        %v418 = vunpack.c.l.b16 %v288
        %v419 = vunpack.c.l.b16 %v291
        %v420 = vunpack.c.l.b16 %v294
        %v421 = vunpack.c.l.b16 %v297
        %v422 = vunpack.c.l.b16 %v300
        %v423 = vunpack.c.l.b16 %v303
        %v424 = vunpack.c.l.b16 %v306
        %v425 = vpack.c.b16 %v409, %v409
        %v426 = vpack.c.b16 %v410, %v410
        %v427 = vpack.c.b16 %v411, %v411
        %v428 = vpack.c.b16 %v412, %v412
        %v429 = vpack.c.b16 %v413, %v413
        %v430 = vpack.c.b16 %v414, %v414
        %v431 = vpack.c.b16 %v415, %v415
        %v432 = vpack.c.b16 %v416, %v416
        %v433 = vpack.c.b16 %v417, %v417
        %v434 = vpack.c.b16 %v418, %v418
        %v435 = vpack.c.b16 %v419, %v419
        %v436 = vpack.c.b16 %v420, %v420
        %v437 = vpack.c.b16 %v421, %v421
        %v438 = vpack.c.b16 %v422, %v422
        %v439 = vpack.c.b16 %v423, %v423
        %v440 = vpack.c.b16 %v424, %v424
        %vm441 = vsmask.f32 7424
        %v443 = vshrl.u32 %v377, 16
        %v445 = vshll.u32 %v377, 16
        %v447 = vrot.slane %v445, 1
        %v448 = vor.u32 %v443, %v447
        %v450 = vshll.u32 %v425, 16
        %v452 = vrot.slane %v450, 1
        %v453 = vsel %vm441, %v448, %v452
        %v455 = vshrl.u32 %v378, 16
        %v457 = vshll.u32 %v378, 16
        %v459 = vrot.slane %v457, 1
        %v460 = vor.u32 %v455, %v459
        %v462 = vshll.u32 %v426, 16
        %v464 = vrot.slane %v462, 1
        %v465 = vsel %vm441, %v460, %v464
        %v467 = vshrl.u32 %v379, 16
        %v469 = vshll.u32 %v379, 16
        %v471 = vrot.slane %v469, 1
        %v472 = vor.u32 %v467, %v471
        %v474 = vshll.u32 %v427, 16
        %v476 = vrot.slane %v474, 1
        %v477 = vsel %vm441, %v472, %v476
        %v479 = vshrl.u32 %v380, 16
        %v481 = vshll.u32 %v380, 16
        %v483 = vrot.slane %v481, 1
        %v484 = vor.u32 %v479, %v483
        %v486 = vshll.u32 %v428, 16
        %v488 = vrot.slane %v486, 1
        %v489 = vsel %vm441, %v484, %v488
        %v491 = vshrl.u32 %v381, 16
        %v493 = vshll.u32 %v381, 16
        %v495 = vrot.slane %v493, 1
        %v496 = vor.u32 %v491, %v495
        %v498 = vshll.u32 %v429, 16
        %v500 = vrot.slane %v498, 1
        %v501 = vsel %vm441, %v496, %v500
        %v503 = vshrl.u32 %v382, 16
        %v505 = vshll.u32 %v382, 16
        %v507 = vrot.slane %v505, 1
        %v508 = vor.u32 %v503, %v507
        %v510 = vshll.u32 %v430, 16
        %v512 = vrot.slane %v510, 1
        %v513 = vsel %vm441, %v508, %v512
        %v515 = vshrl.u32 %v383, 16
        %v517 = vshll.u32 %v383, 16
        %v519 = vrot.slane %v517, 1
        %v520 = vor.u32 %v515, %v519
        %v522 = vshll.u32 %v431, 16
        %v524 = vrot.slane %v522, 1
        %v525 = vsel %vm441, %v520, %v524
        %v527 = vshrl.u32 %v384, 16
        %v529 = vshll.u32 %v384, 16
        %v531 = vrot.slane %v529, 1
        %v532 = vor.u32 %v527, %v531
        %v534 = vshll.u32 %v432, 16
        %v536 = vrot.slane %v534, 1
        %v537 = vsel %vm441, %v532, %v536
        %v539 = vshrl.u32 %v385, 16
        %v541 = vshll.u32 %v385, 16
        %v543 = vrot.slane %v541, 1
        %v544 = vor.u32 %v539, %v543
        %v546 = vshll.u32 %v433, 16
        %v548 = vrot.slane %v546, 1
        %v549 = vsel %vm441, %v544, %v548
        %v551 = vshrl.u32 %v386, 16
        %v553 = vshll.u32 %v386, 16
        %v555 = vrot.slane %v553, 1
        %v556 = vor.u32 %v551, %v555
        %v558 = vshll.u32 %v434, 16
        %v560 = vrot.slane %v558, 1
        %v561 = vsel %vm441, %v556, %v560
        %v563 = vshrl.u32 %v387, 16
        %v565 = vshll.u32 %v387, 16
        %v567 = vrot.slane %v565, 1
        %v568 = vor.u32 %v563, %v567
        %v570 = vshll.u32 %v435, 16
        %v572 = vrot.slane %v570, 1
        %v573 = vsel %vm441, %v568, %v572
        %v575 = vshrl.u32 %v388, 16
        %v577 = vshll.u32 %v388, 16
        %v579 = vrot.slane %v577, 1
        %v580 = vor.u32 %v575, %v579
        %v582 = vshll.u32 %v436, 16
        %v584 = vrot.slane %v582, 1
        %v585 = vsel %vm441, %v580, %v584
        %v587 = vshrl.u32 %v389, 16
        %v589 = vshll.u32 %v389, 16
        %v591 = vrot.slane %v589, 1
        %v592 = vor.u32 %v587, %v591
        %v594 = vshll.u32 %v437, 16
        %v596 = vrot.slane %v594, 1
        %v597 = vsel %vm441, %v592, %v596
        %v599 = vshrl.u32 %v390, 16
        %v601 = vshll.u32 %v390, 16
        %v603 = vrot.slane %v601, 1
        %v604 = vor.u32 %v599, %v603
        %v606 = vshll.u32 %v438, 16
        %v608 = vrot.slane %v606, 1
        %v609 = vsel %vm441, %v604, %v608
        %v611 = vshrl.u32 %v391, 16
        %v613 = vshll.u32 %v391, 16
        %v615 = vrot.slane %v613, 1
        %v616 = vor.u32 %v611, %v615
        %v618 = vshll.u32 %v439, 16
        %v620 = vrot.slane %v618, 1
        %v621 = vsel %vm441, %v616, %v620
        %v623 = vshrl.u32 %v392, 16
        %v625 = vshll.u32 %v392, 16
        %v627 = vrot.slane %v625, 1
        %v628 = vor.u32 %v623, %v627
        %v630 = vshll.u32 %v440, 16
        %v632 = vrot.slane %v630, 1
        %v633 = vsel %vm441, %v628, %v632
        %634 = vrot.lane.b32.xlu0 %v453, 4
        %v635 = vpop.permute.xlu0 %634
        %636 = vrot.lane.b32.xlu0 %v465, 4
        %v637 = vpop.permute.xlu0 %636
        %638 = vrot.lane.b32.xlu0 %v477, 4
        %v639 = vpop.permute.xlu0 %638
        %640 = vrot.lane.b32.xlu0 %v489, 4
        %v641 = vpop.permute.xlu0 %640
        %642 = vrot.lane.b32.xlu0 %v501, 4
        %v643 = vpop.permute.xlu0 %642
        %644 = vrot.lane.b32.xlu0 %v513, 4
        %v645 = vpop.permute.xlu0 %644
        %646 = vrot.lane.b32.xlu0 %v525, 4
        %v647 = vpop.permute.xlu0 %646
        %648 = vrot.lane.b32.xlu0 %v537, 4
        %v649 = vpop.permute.xlu0 %648
        %650 = vrot.lane.b32.xlu0 %v549, 4
        %v651 = vpop.permute.xlu0 %650
        %652 = vrot.lane.b32.xlu0 %v561, 4
        %v653 = vpop.permute.xlu0 %652
        %654 = vrot.lane.b32.xlu0 %v573, 4
        %v655 = vpop.permute.xlu0 %654
        %656 = vrot.lane.b32.xlu0 %v585, 4
        %v657 = vpop.permute.xlu0 %656
        %658 = vrot.lane.b32.xlu0 %v597, 4
        %v659 = vpop.permute.xlu0 %658
        %660 = vrot.lane.b32.xlu0 %v609, 4
        %v661 = vpop.permute.xlu0 %660
        %662 = vrot.lane.b32.xlu0 %v621, 4
        %v663 = vpop.permute.xlu0 %662
        %664 = vrot.lane.b32.xlu0 %v633, 4
        %v665 = vpop.permute.xlu0 %664
        %vm666 = vcmask 1046528
        %v667 = vrot.slane %v377, 1
        %v668 = vrot.slane %v425, 1
        %v669 = vsel %vm666, %v667, %v668
        %v670 = vrot.slane %v378, 1
        %v671 = vrot.slane %v426, 1
        %v672 = vsel %vm666, %v670, %v671
        %v673 = vrot.slane %v379, 1
        %v674 = vrot.slane %v427, 1
        %v675 = vsel %vm666, %v673, %v674
        %v676 = vrot.slane %v380, 1
        %v677 = vrot.slane %v428, 1
        %v678 = vsel %vm666, %v676, %v677
        %v679 = vrot.slane %v381, 1
        %v680 = vrot.slane %v429, 1
        %v681 = vsel %vm666, %v679, %v680
        %v682 = vrot.slane %v382, 1
        %v683 = vrot.slane %v430, 1
        %v684 = vsel %vm666, %v682, %v683
        %v685 = vrot.slane %v383, 1
        %v686 = vrot.slane %v431, 1
        %v687 = vsel %vm666, %v685, %v686
        %v688 = vrot.slane %v384, 1
        %v689 = vrot.slane %v432, 1
        %v690 = vsel %vm666, %v688, %v689
        %v691 = vrot.slane %v385, 1
        %v692 = vrot.slane %v433, 1
        %v693 = vsel %vm666, %v691, %v692
        %v694 = vrot.slane %v386, 1
        %v695 = vrot.slane %v434, 1
        %v696 = vsel %vm666, %v694, %v695
        %v697 = vrot.slane %v387, 1
        %v698 = vrot.slane %v435, 1
        %v699 = vsel %vm666, %v697, %v698
        %v700 = vrot.slane %v388, 1
        %v701 = vrot.slane %v436, 1
        %v702 = vsel %vm666, %v700, %v701
        %v703 = vrot.slane %v389, 1
        %v704 = vrot.slane %v437, 1
        %v705 = vsel %vm666, %v703, %v704
        %v706 = vrot.slane %v390, 1
        %v707 = vrot.slane %v438, 1
        %v708 = vsel %vm666, %v706, %v707
        %v709 = vrot.slane %v391, 1
        %v710 = vrot.slane %v439, 1
        %v711 = vsel %vm666, %v709, %v710
        %v712 = vrot.slane %v392, 1
        %v713 = vrot.slane %v440, 1
        %v714 = vsel %vm666, %v712, %v713
        %715 = vrot.lane.b32.xlu0 %v669, 8
        %v716 = vpop.permute.xlu0 %715
        %717 = vrot.lane.b32.xlu0 %v672, 8
        %v718 = vpop.permute.xlu0 %717
        %719 = vrot.lane.b32.xlu0 %v675, 8
        %v720 = vpop.permute.xlu0 %719
        %721 = vrot.lane.b32.xlu0 %v678, 8
        %v722 = vpop.permute.xlu0 %721
        %723 = vrot.lane.b32.xlu0 %v681, 8
        %v724 = vpop.permute.xlu0 %723
        %725 = vrot.lane.b32.xlu0 %v684, 8
        %v726 = vpop.permute.xlu0 %725
        %727 = vrot.lane.b32.xlu0 %v687, 8
        %v728 = vpop.permute.xlu0 %727
        %729 = vrot.lane.b32.xlu0 %v690, 8
        %v730 = vpop.permute.xlu0 %729
        %731 = vrot.lane.b32.xlu0 %v693, 8
        %v732 = vpop.permute.xlu0 %731
        %733 = vrot.lane.b32.xlu0 %v696, 8
        %v734 = vpop.permute.xlu0 %733
        %735 = vrot.lane.b32.xlu0 %v699, 8
        %v736 = vpop.permute.xlu0 %735
        %737 = vrot.lane.b32.xlu0 %v702, 8
        %v738 = vpop.permute.xlu0 %737
        %739 = vrot.lane.b32.xlu0 %v705, 8
        %v740 = vpop.permute.xlu0 %739
        %741 = vrot.lane.b32.xlu0 %v708, 8
        %v742 = vpop.permute.xlu0 %741
        %743 = vrot.lane.b32.xlu0 %v711, 8
        %v744 = vpop.permute.xlu0 %743
        %745 = vrot.lane.b32.xlu0 %v714, 8
        %v746 = vpop.permute.xlu0 %745
        %v749 = vunpack.c.l.b16 %v307
        %v750 = vunpack.c.l.b16 %v308
        %v751 = vpack.c.b16 %v750, %v749
        %752 = vrot.lane.b32.xlu0 %v378, 12
        %v753 = vpop.permute.xlu0 %752
        %754 = vrot.lane.b32.xlu0 %v379, 12
        %v755 = vpop.permute.xlu0 %754
        %756 = vrot.lane.b32.xlu0 %v380, 12
        %v757 = vpop.permute.xlu0 %756
        %758 = vrot.lane.b32.xlu0 %v381, 12
        %v759 = vpop.permute.xlu0 %758
        %760 = vrot.lane.b32.xlu0 %v382, 12
        %v761 = vpop.permute.xlu0 %760
        %762 = vrot.lane.b32.xlu0 %v383, 12
        %v763 = vpop.permute.xlu0 %762
        %764 = vrot.lane.b32.xlu0 %v384, 12
        %v765 = vpop.permute.xlu0 %764
        %766 = vrot.lane.b32.xlu0 %v385, 12
        %v767 = vpop.permute.xlu0 %766
        %768 = vrot.lane.b32.xlu0 %v386, 12
        %v769 = vpop.permute.xlu0 %768
        %770 = vrot.lane.b32.xlu0 %v387, 12
        %v771 = vpop.permute.xlu0 %770
        %772 = vrot.lane.b32.xlu0 %v388, 12
        %v773 = vpop.permute.xlu0 %772
        %774 = vrot.lane.b32.xlu0 %v389, 12
        %v775 = vpop.permute.xlu0 %774
        %776 = vrot.lane.b32.xlu0 %v390, 12
        %v777 = vpop.permute.xlu0 %776
        %778 = vrot.lane.b32.xlu0 %v391, 12
        %v779 = vpop.permute.xlu0 %778
        %780 = vrot.lane.b32.xlu0 %v392, 12
        %v781 = vpop.permute.xlu0 %780
        %782 = vrot.lane.b32.xlu0 %v751, 12
        %v783 = vpop.permute.xlu0 %782
        %v785 = vunpack.c.l.b16 %v309
        %v786 = vpack.c.b16 %v785, %v785
        %v788 = vshrl.u32 %v751, 16
        %v790 = vshll.u32 %v751, 16
        %v792 = vrot.slane %v790, 1
        %v793 = vor.u32 %v788, %v792
        %v795 = vshll.u32 %v786, 16
        %v797 = vrot.slane %v795, 1
        %v798 = vsel %vm441, %v793, %v797
        %799 = vrot.lane.b32.xlu0 %v465, 16
        %v800 = vpop.permute.xlu0 %799
        %801 = vrot.lane.b32.xlu0 %v477, 16
        %v802 = vpop.permute.xlu0 %801
        %803 = vrot.lane.b32.xlu0 %v489, 16
        %v804 = vpop.permute.xlu0 %803
        %805 = vrot.lane.b32.xlu0 %v501, 16
        %v806 = vpop.permute.xlu0 %805
        %807 = vrot.lane.b32.xlu0 %v513, 16
        %v808 = vpop.permute.xlu0 %807
        %809 = vrot.lane.b32.xlu0 %v525, 16
        %v810 = vpop.permute.xlu0 %809
        %811 = vrot.lane.b32.xlu0 %v537, 16
        %v812 = vpop.permute.xlu0 %811
        %813 = vrot.lane.b32.xlu0 %v549, 16
        %v814 = vpop.permute.xlu0 %813
        %815 = vrot.lane.b32.xlu0 %v561, 16
        %v816 = vpop.permute.xlu0 %815
        %817 = vrot.lane.b32.xlu0 %v573, 16
        %v818 = vpop.permute.xlu0 %817
        %819 = vrot.lane.b32.xlu0 %v585, 16
        %v820 = vpop.permute.xlu0 %819
        %821 = vrot.lane.b32.xlu0 %v597, 16
        %v822 = vpop.permute.xlu0 %821
        %823 = vrot.lane.b32.xlu0 %v609, 16
        %v824 = vpop.permute.xlu0 %823
        %825 = vrot.lane.b32.xlu0 %v621, 16
        %v826 = vpop.permute.xlu0 %825
        %827 = vrot.lane.b32.xlu0 %v633, 16
        %v828 = vpop.permute.xlu0 %827
        %829 = vrot.lane.b32.xlu0 %v798, 16
        %v830 = vpop.permute.xlu0 %829
        %v831 = vrot.slane %v751, 1
        %v832 = vrot.slane %v786, 1
        %v833 = vsel %vm666, %v831, %v832
        %834 = vrot.lane.b32.xlu0 %v672, 20
        %v835 = vpop.permute.xlu0 %834
        %836 = vrot.lane.b32.xlu0 %v675, 20
        %v837 = vpop.permute.xlu0 %836
        %838 = vrot.lane.b32.xlu0 %v678, 20
        %v839 = vpop.permute.xlu0 %838
        %840 = vrot.lane.b32.xlu0 %v681, 20
        %v841 = vpop.permute.xlu0 %840
        %842 = vrot.lane.b32.xlu0 %v684, 20
        %v843 = vpop.permute.xlu0 %842
        %844 = vrot.lane.b32.xlu0 %v687, 20
        %v845 = vpop.permute.xlu0 %844
        %846 = vrot.lane.b32.xlu0 %v690, 20
        %v847 = vpop.permute.xlu0 %846
        %848 = vrot.lane.b32.xlu0 %v693, 20
        %v849 = vpop.permute.xlu0 %848
        %850 = vrot.lane.b32.xlu0 %v696, 20
        %v851 = vpop.permute.xlu0 %850
        %852 = vrot.lane.b32.xlu0 %v699, 20
        %v853 = vpop.permute.xlu0 %852
        %854 = vrot.lane.b32.xlu0 %v702, 20
        %v855 = vpop.permute.xlu0 %854
        %856 = vrot.lane.b32.xlu0 %v705, 20
        %v857 = vpop.permute.xlu0 %856
        %858 = vrot.lane.b32.xlu0 %v708, 20
        %v859 = vpop.permute.xlu0 %858
        %860 = vrot.lane.b32.xlu0 %v711, 20
        %v861 = vpop.permute.xlu0 %860
        %862 = vrot.lane.b32.xlu0 %v714, 20
        %v863 = vpop.permute.xlu0 %862
        %864 = vrot.lane.b32.xlu0 %v833, 20
        %v865 = vpop.permute.xlu0 %864
        %v868 = vunpack.c.l.b16 %v310
        %v869 = vunpack.c.l.b16 %v311
        %v870 = vpack.c.b16 %v869, %v868
        %871 = vrot.lane.b32.xlu0 %v379, 24
        %v872 = vpop.permute.xlu0 %871
        %873 = vrot.lane.b32.xlu0 %v380, 24
        %v874 = vpop.permute.xlu0 %873
        %875 = vrot.lane.b32.xlu0 %v381, 24
        %v876 = vpop.permute.xlu0 %875
        %877 = vrot.lane.b32.xlu0 %v382, 24
        %v878 = vpop.permute.xlu0 %877
        %879 = vrot.lane.b32.xlu0 %v383, 24
        %v880 = vpop.permute.xlu0 %879
        %881 = vrot.lane.b32.xlu0 %v384, 24
        %v882 = vpop.permute.xlu0 %881
        %883 = vrot.lane.b32.xlu0 %v385, 24
        %v884 = vpop.permute.xlu0 %883
        %885 = vrot.lane.b32.xlu0 %v386, 24
        %v886 = vpop.permute.xlu0 %885
        %887 = vrot.lane.b32.xlu0 %v387, 24
        %v888 = vpop.permute.xlu0 %887
        %889 = vrot.lane.b32.xlu0 %v388, 24
        %v890 = vpop.permute.xlu0 %889
        %891 = vrot.lane.b32.xlu0 %v389, 24
        %v892 = vpop.permute.xlu0 %891
        %893 = vrot.lane.b32.xlu0 %v390, 24
        %v894 = vpop.permute.xlu0 %893
        %895 = vrot.lane.b32.xlu0 %v391, 24
        %v896 = vpop.permute.xlu0 %895
        %897 = vrot.lane.b32.xlu0 %v392, 24
        %v898 = vpop.permute.xlu0 %897
        %899 = vrot.lane.b32.xlu0 %v751, 24
        %v900 = vpop.permute.xlu0 %899
        %901 = vrot.lane.b32.xlu0 %v870, 24
        %v902 = vpop.permute.xlu0 %901
        %v904 = vunpack.c.l.b16 %v312
        %v905 = vpack.c.b16 %v904, %v904
        %v907 = vshrl.u32 %v870, 16
        %v909 = vshll.u32 %v870, 16
        %v911 = vrot.slane %v909, 1
        %v912 = vor.u32 %v907, %v911
        %v914 = vshll.u32 %v905, 16
        %v916 = vrot.slane %v914, 1
        %v917 = vsel %vm441, %v912, %v916
        %918 = vrot.lane.b32.xlu0 %v477, 28
        %v919 = vpop.permute.xlu0 %918
        %920 = vrot.lane.b32.xlu0 %v489, 28
        %v921 = vpop.permute.xlu0 %920
        %922 = vrot.lane.b32.xlu0 %v501, 28
        %v923 = vpop.permute.xlu0 %922
        %924 = vrot.lane.b32.xlu0 %v513, 28
        %v925 = vpop.permute.xlu0 %924
        %926 = vrot.lane.b32.xlu0 %v525, 28
        %v927 = vpop.permute.xlu0 %926
        %928 = vrot.lane.b32.xlu0 %v537, 28
        %v929 = vpop.permute.xlu0 %928
        %930 = vrot.lane.b32.xlu0 %v549, 28
        %v931 = vpop.permute.xlu0 %930
        %932 = vrot.lane.b32.xlu0 %v561, 28
        %v933 = vpop.permute.xlu0 %932
        %934 = vrot.lane.b32.xlu0 %v573, 28
        %v935 = vpop.permute.xlu0 %934
        %936 = vrot.lane.b32.xlu0 %v585, 28
        %v937 = vpop.permute.xlu0 %936
        %938 = vrot.lane.b32.xlu0 %v597, 28
        %v939 = vpop.permute.xlu0 %938
        %940 = vrot.lane.b32.xlu0 %v609, 28
        %v941 = vpop.permute.xlu0 %940
        %942 = vrot.lane.b32.xlu0 %v621, 28
        %v943 = vpop.permute.xlu0 %942
        %944 = vrot.lane.b32.xlu0 %v633, 28
        %v945 = vpop.permute.xlu0 %944
        %946 = vrot.lane.b32.xlu0 %v798, 28
        %v947 = vpop.permute.xlu0 %946
        %948 = vrot.lane.b32.xlu0 %v917, 28
        %v949 = vpop.permute.xlu0 %948
        %v950 = vrot.slane %v870, 1
        %v951 = vrot.slane %v905, 1
        %v952 = vsel %vm666, %v950, %v951
        %953 = vrot.lane.b32.xlu0 %v675, 32
        %v954 = vpop.permute.xlu0 %953
        %955 = vrot.lane.b32.xlu0 %v678, 32
        %v956 = vpop.permute.xlu0 %955
        %957 = vrot.lane.b32.xlu0 %v681, 32
        %v958 = vpop.permute.xlu0 %957
        %959 = vrot.lane.b32.xlu0 %v684, 32
        %v960 = vpop.permute.xlu0 %959
        %961 = vrot.lane.b32.xlu0 %v687, 32
        %v962 = vpop.permute.xlu0 %961
        %963 = vrot.lane.b32.xlu0 %v690, 32
        %v964 = vpop.permute.xlu0 %963
        %965 = vrot.lane.b32.xlu0 %v693, 32
        %v966 = vpop.permute.xlu0 %965
        %967 = vrot.lane.b32.xlu0 %v696, 32
        %v968 = vpop.permute.xlu0 %967
        %969 = vrot.lane.b32.xlu0 %v699, 32
        %v970 = vpop.permute.xlu0 %969
        %971 = vrot.lane.b32.xlu0 %v702, 32
        %v972 = vpop.permute.xlu0 %971
        %973 = vrot.lane.b32.xlu0 %v705, 32
        %v974 = vpop.permute.xlu0 %973
        %975 = vrot.lane.b32.xlu0 %v708, 32
        %v976 = vpop.permute.xlu0 %975
        %977 = vrot.lane.b32.xlu0 %v711, 32
        %v978 = vpop.permute.xlu0 %977
        %979 = vrot.lane.b32.xlu0 %v714, 32
        %v980 = vpop.permute.xlu0 %979
        %981 = vrot.lane.b32.xlu0 %v833, 32
        %v982 = vpop.permute.xlu0 %981
        %983 = vrot.lane.b32.xlu0 %v952, 32
        %v984 = vpop.permute.xlu0 %983
        %vm985 = vcmask 31744
        %v987 = vsel %vm985, %v377, %v635
        %v989 = vsel %vm985, %v378, %v637
        %v991 = vsel %vm985, %v379, %v639
        %v993 = vsel %vm985, %v380, %v641
        %v995 = vsel %vm985, %v381, %v643
        %v997 = vsel %vm985, %v382, %v645
        %v999 = vsel %vm985, %v383, %v647
        %v1001 = vsel %vm985, %v384, %v649
        %v1003 = vsel %vm985, %v385, %v651
        %v1005 = vsel %vm985, %v386, %v653
        %v1007 = vsel %vm985, %v387, %v655
        %v1009 = vsel %vm985, %v388, %v657
        %v1011 = vsel %vm985, %v389, %v659
        %v1013 = vsel %vm985, %v390, %v661
        %v1015 = vsel %vm985, %v391, %v663
        %v1017 = vsel %vm985, %v392, %v665
        %vm1018 = vcmask 64512
        %v1020 = vsel %vm1018, %v987, %v716
        %v1022 = vsel %vm1018, %v989, %v718
        %v1024 = vsel %vm1018, %v991, %v720
        %v1026 = vsel %vm1018, %v993, %v722
        %v1028 = vsel %vm1018, %v995, %v724
        %v1030 = vsel %vm1018, %v997, %v726
        %v1032 = vsel %vm1018, %v999, %v728
        %v1034 = vsel %vm1018, %v1001, %v730
        %v1036 = vsel %vm1018, %v1003, %v732
        %v1038 = vsel %vm1018, %v1005, %v734
        %v1040 = vsel %vm1018, %v1007, %v736
        %v1042 = vsel %vm1018, %v1009, %v738
        %v1044 = vsel %vm1018, %v1011, %v740
        %v1046 = vsel %vm1018, %v1013, %v742
        %v1048 = vsel %vm1018, %v1015, %v744
        %v1050 = vsel %vm1018, %v1017, %v746
        %vm1051 = vcmask 97280
        %v1053 = vsel %vm1051, %v1020, %v753
        %v1055 = vsel %vm1051, %v1022, %v755
        %v1057 = vsel %vm1051, %v1024, %v757
        %v1059 = vsel %vm1051, %v1026, %v759
        %v1061 = vsel %vm1051, %v1028, %v761
        %v1063 = vsel %vm1051, %v1030, %v763
        %v1065 = vsel %vm1051, %v1032, %v765
        %v1067 = vsel %vm1051, %v1034, %v767
        %v1069 = vsel %vm1051, %v1036, %v769
        %v1071 = vsel %vm1051, %v1038, %v771
        %v1073 = vsel %vm1051, %v1040, %v773
        %v1075 = vsel %vm1051, %v1042, %v775
        %v1077 = vsel %vm1051, %v1044, %v777
        %v1079 = vsel %vm1051, %v1046, %v779
        %v1081 = vsel %vm1051, %v1048, %v781
        %v1083 = vsel %vm1051, %v1050, %v783
        %vm1084 = vcmask 130048
        %v1086 = vsel %vm1084, %v1053, %v800
        %v1088 = vsel %vm1084, %v1055, %v802
        %v1090 = vsel %vm1084, %v1057, %v804
        %v1092 = vsel %vm1084, %v1059, %v806
        %v1094 = vsel %vm1084, %v1061, %v808
        %v1096 = vsel %vm1084, %v1063, %v810
        %v1098 = vsel %vm1084, %v1065, %v812
        %v1100 = vsel %vm1084, %v1067, %v814
        %v1102 = vsel %vm1084, %v1069, %v816
        %v1104 = vsel %vm1084, %v1071, %v818
        %v1106 = vsel %vm1084, %v1073, %v820
        %v1108 = vsel %vm1084, %v1075, %v822
        %v1110 = vsel %vm1084, %v1077, %v824
        %v1112 = vsel %vm1084, %v1079, %v826
        %v1114 = vsel %vm1084, %v1081, %v828
        %v1116 = vsel %vm1084, %v1083, %v830
        %vm1117 = vcmask 162816
        %v1119 = vsel %vm1117, %v1086, %v835
        %v1121 = vsel %vm1117, %v1088, %v837
        %v1123 = vsel %vm1117, %v1090, %v839
        %v1125 = vsel %vm1117, %v1092, %v841
        %v1127 = vsel %vm1117, %v1094, %v843
        %v1129 = vsel %vm1117, %v1096, %v845
        %v1131 = vsel %vm1117, %v1098, %v847
        %v1133 = vsel %vm1117, %v1100, %v849
        %v1135 = vsel %vm1117, %v1102, %v851
        %v1137 = vsel %vm1117, %v1104, %v853
        %v1139 = vsel %vm1117, %v1106, %v855
        %v1141 = vsel %vm1117, %v1108, %v857
        %v1143 = vsel %vm1117, %v1110, %v859
        %v1145 = vsel %vm1117, %v1112, %v861
        %v1147 = vsel %vm1117, %v1114, %v863
        %v1149 = vsel %vm1117, %v1116, %v865
        %vm1150 = vcmask 195584
        %v1152 = vsel %vm1150, %v1119, %v872
        %v1154 = vsel %vm1150, %v1121, %v874
        %v1156 = vsel %vm1150, %v1123, %v876
        %v1158 = vsel %vm1150, %v1125, %v878
        %v1160 = vsel %vm1150, %v1127, %v880
        %v1162 = vsel %vm1150, %v1129, %v882
        %v1164 = vsel %vm1150, %v1131, %v884
        %v1166 = vsel %vm1150, %v1133, %v886
        %v1168 = vsel %vm1150, %v1135, %v888
        %v1170 = vsel %vm1150, %v1137, %v890
        %v1172 = vsel %vm1150, %v1139, %v892
        %v1174 = vsel %vm1150, %v1141, %v894
        %v1176 = vsel %vm1150, %v1143, %v896
        %v1178 = vsel %vm1150, %v1145, %v898
        %v1180 = vsel %vm1150, %v1147, %v900
        %v1182 = vsel %vm1150, %v1149, %v902
        %vm1183 = vcmask 228352
        %v1185 = vsel %vm1183, %v1152, %v919
        %v1187 = vsel %vm1183, %v1154, %v921
        %v1189 = vsel %vm1183, %v1156, %v923
        %v1191 = vsel %vm1183, %v1158, %v925
        %v1193 = vsel %vm1183, %v1160, %v927
        %v1195 = vsel %vm1183, %v1162, %v929
        %v1197 = vsel %vm1183, %v1164, %v931
        %v1199 = vsel %vm1183, %v1166, %v933
        %v1201 = vsel %vm1183, %v1168, %v935
        %v1203 = vsel %vm1183, %v1170, %v937
        %v1205 = vsel %vm1183, %v1172, %v939
        %v1207 = vsel %vm1183, %v1174, %v941
        %v1209 = vsel %vm1183, %v1176, %v943
        %v1211 = vsel %vm1183, %v1178, %v945
        %v1213 = vsel %vm1183, %v1180, %v947
        %v1215 = vsel %vm1183, %v1182, %v949
        %vm1216 = vcmask 261120
        %v1218 = vsel %vm1216, %v1185, %v954
        %v1220 = vsel %vm1216, %v1187, %v956
        %v1222 = vsel %vm1216, %v1189, %v958
        %v1224 = vsel %vm1216, %v1191, %v960
        %v1226 = vsel %vm1216, %v1193, %v962
        %v1228 = vsel %vm1216, %v1195, %v964
        %v1230 = vsel %vm1216, %v1197, %v966
        %v1232 = vsel %vm1216, %v1199, %v968
        %v1234 = vsel %vm1216, %v1201, %v970
        %v1236 = vsel %vm1216, %v1203, %v972
        %v1238 = vsel %vm1216, %v1205, %v974
        %v1240 = vsel %vm1216, %v1207, %v976
        %v1242 = vsel %vm1216, %v1209, %v978
        %v1244 = vsel %vm1216, %v1211, %v980
        %v1246 = vsel %vm1216, %v1213, %v982
        %v1248 = vsel %vm1216, %v1215, %v984
        %v1249 = vld [vmem:[#allocation5] sm:$0xf]
        %v1250 = vld [vmem:[#allocation5 + $0x4] sm:$0xf]
        %v1251 = vld [vmem:[#allocation5 + $0x8] sm:$0xf]
        %v1252 = vld [vmem:[#allocation5 + $0xc] sm:$0xf]
        %v1253 = vld [vmem:[#allocation5 + $0x10] sm:$0x3]
        %v1254 = vld [vmem:[#allocation7] sm:$0x1]
        %v1256 = vlaneseq
        %v1257 = vshrl.u32 %v1256, 7
        %v1258 = vsub.s32 0, %v1257
        %v1259 = vrot.slane %v1254, %v1258
        %v1266 = vunpack.c.l.b16 %v1249
        %v1267 = vunpack.c.l.b16 %v1250
        %v1268 = vunpack.c.l.b16 %v1251
        %v1269 = vunpack.c.l.b16 %v1252
        %v1270 = vunpack.c.l.b16 %v1253
        %v1271 = vpack.c.b16 %v1267, %v1266
        %v1272 = vpack.c.b16 %v1269, %v1268
        %v1273 = vpack.c.b16 %v1270, %v1270
        %vm1276 = vcmask 293888
        %v1277 = vsel %vm1276, %v1218, 0
        %v1279 = vsel %vm1276, %v1220, 0
        %v1281 = vsel %vm1276, %v1222, 0
        %v1283 = vsel %vm1276, %v1224, 0
        %v1285 = vsel %vm1276, %v1226, 0
        %v1287 = vsel %vm1276, %v1228, 0
        %v1289 = vsel %vm1276, %v1230, 0
        %v1291 = vsel %vm1276, %v1232, 0
        %v1293 = vsel %vm1276, %v1234, 0
        %v1295 = vsel %vm1276, %v1236, 0
        %v1297 = vsel %vm1276, %v1238, 0
        %v1299 = vsel %vm1276, %v1240, 0
        %v1301 = vsel %vm1276, %v1242, 0
        %v1303 = vsel %vm1276, %v1244, 0
        %v1305 = vsel %vm1276, %v1246, 0
        %v1307 = vsel %vm1276, %v1248, 0
        %vm1309 = vcmask 1041408
        %v1311 = vsel %vm1309, %v1273, 0
        %1313 = vmatprep.subr.bf16.mxu0 0
        %1314 = vmatpush1.bf16.msra.mxu0 %v1271
        %1315 = vmatprep.subr.bf16.mxu0 0
        %1316 = vmatpush1.bf16.msra.mxu0 %v1272
        %1317 = vmatprep.subr.bf16.mxu0 0
        %1318 = vmatpush1.bf16.msra.mxu0 %v1311
        %1319 = vmatprep.subr.bf16.mxu0 0
        %1320 = vmatpush1.bf16.msra.mxu0 0
        %1321 = vmatprep.subr.bf16.mxu0 0
        %1322 = vmatpush1.bf16.msra.mxu0 0
        %1323 = vmatprep.subr.bf16.mxu0 0
        %1324 = vmatpush1.bf16.msra.mxu0 0
        %1325 = vmatprep.subr.bf16.mxu0 0
        %1326 = vmatpush1.bf16.msra.mxu0 0
        %1327 = vmatprep.subr.bf16.mxu0 0
        %1328 = vmatpush1.bf16.msra.mxu0 0
        %1329 = vmatprep.subr.bf16.mxu0 0
        %1330 = vmatpush1.bf16.msra.mxu0 0
        %1331 = vmatprep.subr.bf16.mxu0 0
        %1332 = vmatpush1.bf16.msra.mxu0 0
        %1333 = vmatprep.subr.bf16.mxu0 0
        %1334 = vmatpush1.bf16.msra.mxu0 0
        %1335 = vmatprep.subr.bf16.mxu0 0
        %1336 = vmatpush1.bf16.msra.mxu0 0
        %1337 = vmatprep.subr.bf16.mxu0 0
        %1338 = vmatpush1.bf16.msra.mxu0 0
        %1339 = vmatprep.subr.bf16.mxu0 0
        %1340 = vmatpush1.bf16.msra.mxu0 0
        %1341 = vmatprep.subr.bf16.mxu0 0
        %1342 = vmatpush1.bf16.msra.mxu0 0
        %1343 = vmatprep.subr.bf16.mxu0 0
        %1344 = vmatpush1.bf16.msra.mxu0 0
        %1345 = vmatprep.mubr.bf16.mxu0 0
        %1346 = vmatmul.mubr.bf16.gmra.mrb[0].mxu0 %v1277
        %v1347 = vpop.f32.mrb[0].mxu0
        %v1348 = vadd.f32 %v1259, %v1347
        %v1349 = vpop.f32.mrb[0].mxu0
        %v1350 = vpop.f32.mrb[0].mxu0
        %v1351 = vadd.f32 %v1259, %v1350
        %v1352 = vpop.f32.mrb[0].mxu0
        %1353 = vmatprep.mubr.bf16.mxu0 0
        %1354 = vmatmul.mubr.bf16.gmra.mrb[0].mxu0 %v1279
        %v1355 = vpop.f32.mrb[0].mxu0
        %v1356 = vadd.f32 %v1259, %v1355
        %v1357 = vpop.f32.mrb[0].mxu0
        %v1358 = vpop.f32.mrb[0].mxu0
        %v1359 = vadd.f32 %v1259, %v1358
        %v1360 = vpop.f32.mrb[0].mxu0
        %1361 = vmatprep.mubr.bf16.mxu0 0
        %1362 = vmatmul.mubr.bf16.gmra.mrb[0].mxu0 %v1281
        %v1363 = vpop.f32.mrb[0].mxu0
        %v1364 = vadd.f32 %v1259, %v1363
        %v1365 = vpop.f32.mrb[0].mxu0
        %v1366 = vpop.f32.mrb[0].mxu0
        %v1367 = vadd.f32 %v1259, %v1366
        %v1368 = vpop.f32.mrb[0].mxu0
        %1369 = vmatprep.mubr.bf16.mxu0 0
        %1370 = vmatmul.mubr.bf16.gmra.mrb[0].mxu0 %v1283
        %v1371 = vpop.f32.mrb[0].mxu0
        %v1372 = vadd.f32 %v1259, %v1371
        %v1373 = vpop.f32.mrb[0].mxu0
        %v1374 = vpop.f32.mrb[0].mxu0
        %v1375 = vadd.f32 %v1259, %v1374
        %v1376 = vpop.f32.mrb[0].mxu0
        %1377 = vmatprep.mubr.bf16.mxu0 0
        %1378 = vmatmul.mubr.bf16.gmra.mrb[0].mxu0 %v1285
        %v1379 = vpop.f32.mrb[0].mxu0
        %v1380 = vadd.f32 %v1259, %v1379
        %v1381 = vpop.f32.mrb[0].mxu0
        %v1382 = vpop.f32.mrb[0].mxu0
        %v1383 = vadd.f32 %v1259, %v1382
        %v1384 = vpop.f32.mrb[0].mxu0
        %1385 = vmatprep.mubr.bf16.mxu0 0
        %1386 = vmatmul.mubr.bf16.gmra.mrb[0].mxu0 %v1287
        %v1387 = vpop.f32.mrb[0].mxu0
        %v1388 = vadd.f32 %v1259, %v1387
        %v1389 = vpop.f32.mrb[0].mxu0
        %v1390 = vpop.f32.mrb[0].mxu0
        %v1391 = vadd.f32 %v1259, %v1390
        %v1392 = vpop.f32.mrb[0].mxu0
        %1393 = vmatprep.mubr.bf16.mxu0 0
        %1394 = vmatmul.mubr.bf16.gmra.mrb[0].mxu0 %v1289
        %v1395 = vpop.f32.mrb[0].mxu0
        %v1396 = vadd.f32 %v1259, %v1395
        %v1397 = vpop.f32.mrb[0].mxu0
        %v1398 = vpop.f32.mrb[0].mxu0
        %v1399 = vadd.f32 %v1259, %v1398
        %v1400 = vpop.f32.mrb[0].mxu0
        %1401 = vmatprep.mubr.bf16.mxu0 0
        %1402 = vmatmul.mubr.bf16.gmra.mrb[0].mxu0 %v1291
        %v1403 = vpop.f32.mrb[0].mxu0
        %v1404 = vadd.f32 %v1259, %v1403
        %v1405 = vpop.f32.mrb[0].mxu0
        %v1406 = vpop.f32.mrb[0].mxu0
        %v1407 = vadd.f32 %v1259, %v1406
        %v1408 = vpop.f32.mrb[0].mxu0
        %1409 = vmatprep.mubr.bf16.mxu0 0
        %1410 = vmatmul.mubr.bf16.gmra.mrb[0].mxu0 %v1293
        %v1411 = vpop.f32.mrb[0].mxu0
        %v1412 = vadd.f32 %v1259, %v1411
        %v1413 = vpop.f32.mrb[0].mxu0
        %v1414 = vpop.f32.mrb[0].mxu0
        %v1415 = vadd.f32 %v1259, %v1414
        %v1416 = vpop.f32.mrb[0].mxu0
        %1417 = vmatprep.mubr.bf16.mxu0 0
        %1418 = vmatmul.mubr.bf16.gmra.mrb[0].mxu0 %v1295
        %v1419 = vpop.f32.mrb[0].mxu0
        %v1420 = vadd.f32 %v1259, %v1419
        %v1421 = vpop.f32.mrb[0].mxu0
        %v1422 = vpop.f32.mrb[0].mxu0
        %v1423 = vadd.f32 %v1259, %v1422
        %v1424 = vpop.f32.mrb[0].mxu0
        %1425 = vmatprep.mubr.bf16.mxu0 0
        %1426 = vmatmul.mubr.bf16.gmra.mrb[0].mxu0 %v1297
        %v1427 = vpop.f32.mrb[0].mxu0
        %v1428 = vadd.f32 %v1259, %v1427
        %v1429 = vpop.f32.mrb[0].mxu0
        %v1430 = vpop.f32.mrb[0].mxu0
        %v1431 = vadd.f32 %v1259, %v1430
        %v1432 = vpop.f32.mrb[0].mxu0
        %1433 = vmatprep.mubr.bf16.mxu0 0
        %1434 = vmatmul.mubr.bf16.gmra.mrb[0].mxu0 %v1299
        %v1435 = vpop.f32.mrb[0].mxu0
        %v1436 = vadd.f32 %v1259, %v1435
        %v1437 = vpop.f32.mrb[0].mxu0
        %v1438 = vpop.f32.mrb[0].mxu0
        %v1439 = vadd.f32 %v1259, %v1438
        %v1440 = vpop.f32.mrb[0].mxu0
        %1441 = vmatprep.mubr.bf16.mxu0 0
        %1442 = vmatmul.mubr.bf16.gmra.mrb[0].mxu0 %v1301
        %v1443 = vpop.f32.mrb[0].mxu0
        %v1444 = vadd.f32 %v1259, %v1443
        %v1445 = vpop.f32.mrb[0].mxu0
        %v1446 = vpop.f32.mrb[0].mxu0
        %v1447 = vadd.f32 %v1259, %v1446
        %v1448 = vpop.f32.mrb[0].mxu0
        %1449 = vmatprep.mubr.bf16.mxu0 0
        %1450 = vmatmul.mubr.bf16.gmra.mrb[0].mxu0 %v1303
        %v1451 = vpop.f32.mrb[0].mxu0
        %v1452 = vadd.f32 %v1259, %v1451
        %v1453 = vpop.f32.mrb[0].mxu0
        %v1454 = vpop.f32.mrb[0].mxu0
        %v1455 = vadd.f32 %v1259, %v1454
        %v1456 = vpop.f32.mrb[0].mxu0
        %1457 = vmatprep.mubr.bf16.mxu0 0
        %1458 = vmatmul.mubr.bf16.gmra.mrb[0].mxu0 %v1305
        %v1459 = vpop.f32.mrb[0].mxu0
        %v1460 = vadd.f32 %v1259, %v1459
        %v1461 = vpop.f32.mrb[0].mxu0
        %v1462 = vpop.f32.mrb[0].mxu0
        %v1463 = vadd.f32 %v1259, %v1462
        %v1464 = vpop.f32.mrb[0].mxu0
        %1465 = vmatprep.mubr.bf16.mxu0 0
        %1466 = vmatmul.mubr.bf16.gmra.mrb[0].mxu0 %v1307
        %v1467 = vpop.f32.mrb[0].mxu0
        %v1468 = vadd.f32 %v1259, %v1467
        %v1469 = vpop.f32.mrb[0].mxu0
        %v1470 = vpop.f32.mrb[0].mxu0
        %v1471 = vadd.f32 %v1259, %v1470
        %v1472 = vpop.f32.mrb[0].mxu0
        %1473 = vdwg.mxu0
        %v1474 = vmax.f32 %v1348, 0.0
        %v1475 = vmax.f32 %v1351, 0.0
        %v1476 = vmax.f32 %v1356, 0.0
        %v1477 = vmax.f32 %v1359, 0.0
        %v1478 = vmax.f32 %v1364, 0.0
        %v1479 = vmax.f32 %v1367, 0.0
        %v1480 = vmax.f32 %v1372, 0.0
        %v1481 = vmax.f32 %v1375, 0.0
        %v1482 = vmax.f32 %v1380, 0.0
        %v1483 = vmax.f32 %v1383, 0.0
        %v1484 = vmax.f32 %v1388, 0.0
        %v1485 = vmax.f32 %v1391, 0.0
        %v1486 = vmax.f32 %v1396, 0.0
        %v1487 = vmax.f32 %v1399, 0.0
        %v1488 = vmax.f32 %v1404, 0.0
        %v1489 = vmax.f32 %v1407, 0.0
        %v1490 = vmax.f32 %v1412, 0.0
        %v1491 = vmax.f32 %v1415, 0.0
        %v1492 = vmax.f32 %v1420, 0.0
        %v1493 = vmax.f32 %v1423, 0.0
        %v1494 = vmax.f32 %v1428, 0.0
        %v1495 = vmax.f32 %v1431, 0.0
        %v1496 = vmax.f32 %v1436, 0.0
        %v1497 = vmax.f32 %v1439, 0.0
        %v1498 = vmax.f32 %v1444, 0.0
        %v1499 = vmax.f32 %v1447, 0.0
        %v1500 = vmax.f32 %v1452, 0.0
        %v1501 = vmax.f32 %v1455, 0.0
        %v1502 = vmax.f32 %v1460, 0.0
        %v1503 = vmax.f32 %v1463, 0.0
        %v1504 = vmax.f32 %v1468, 0.0
        %v1505 = vmax.f32 %v1471, 0.0
        %v1506 = vpack.c.bf16 %v1475, %v1474
        %v1507 = vpack.c.bf16 %v1477, %v1476
        %v1508 = vpack.c.bf16 %v1479, %v1478
        %v1509 = vpack.c.bf16 %v1481, %v1480
        %v1510 = vpack.c.bf16 %v1483, %v1482
        %v1511 = vpack.c.bf16 %v1485, %v1484
        %v1512 = vpack.c.bf16 %v1487, %v1486
        %v1513 = vpack.c.bf16 %v1489, %v1488
        %v1514 = vpack.c.bf16 %v1491, %v1490
        %v1515 = vpack.c.bf16 %v1493, %v1492
        %v1516 = vpack.c.bf16 %v1495, %v1494
        %v1517 = vpack.c.bf16 %v1497, %v1496
        %v1518 = vpack.c.bf16 %v1499, %v1498
        %v1519 = vpack.c.bf16 %v1501, %v1500
        %v1520 = vpack.c.bf16 %v1503, %v1502
        %v1521 = vpack.c.bf16 %v1505, %v1504
        %v1538 = vunpack.c.l.b16 %v1506
        %v1539 = vunpack.c.h.b16 %v1506
        %v1540 = vunpack.c.l.b16 %v1507
        %v1541 = vunpack.c.h.b16 %v1507
        %v1542 = vunpack.c.l.b16 %v1508
        %v1543 = vunpack.c.h.b16 %v1508
        %v1544 = vunpack.c.l.b16 %v1509
        %v1545 = vunpack.c.h.b16 %v1509
        %v1546 = vunpack.c.l.b16 %v1510
        %v1547 = vunpack.c.h.b16 %v1510
        %v1548 = vunpack.c.l.b16 %v1511
        %v1549 = vunpack.c.h.b16 %v1511
        %v1550 = vunpack.c.l.b16 %v1512
        %v1551 = vunpack.c.h.b16 %v1512
        %v1552 = vunpack.c.l.b16 %v1513
        %v1553 = vunpack.c.h.b16 %v1513
        %v1554 = vunpack.c.l.b16 %v1514
        %v1555 = vunpack.c.h.b16 %v1514
        %v1556 = vunpack.c.l.b16 %v1515
        %v1557 = vunpack.c.h.b16 %v1515
        %v1558 = vunpack.c.l.b16 %v1516
        %v1559 = vunpack.c.h.b16 %v1516
        %v1560 = vunpack.c.l.b16 %v1517
        %v1561 = vunpack.c.h.b16 %v1517
        %v1562 = vunpack.c.l.b16 %v1518
        %v1563 = vunpack.c.h.b16 %v1518
        %v1564 = vunpack.c.l.b16 %v1519
        %v1565 = vunpack.c.h.b16 %v1519
        %v1566 = vunpack.c.l.b16 %v1520
        %v1567 = vunpack.c.h.b16 %v1520
        %v1568 = vunpack.c.l.b16 %v1521
        %v1569 = vunpack.c.h.b16 %v1521
        %v1570 = vpack.c.b16 %v1538, %v1538
        %v1571 = vpack.c.b16 %v1539, %v1539
        %v1572 = vpack.c.b16 %v1540, %v1540
        %v1573 = vpack.c.b16 %v1541, %v1541
        %v1574 = vpack.c.b16 %v1542, %v1542
        %v1575 = vpack.c.b16 %v1543, %v1543
        %v1576 = vpack.c.b16 %v1544, %v1544
        %v1577 = vpack.c.b16 %v1545, %v1545
        %v1578 = vpack.c.b16 %v1546, %v1546
        %v1579 = vpack.c.b16 %v1547, %v1547
        %v1580 = vpack.c.b16 %v1548, %v1548
        %v1581 = vpack.c.b16 %v1549, %v1549
        %v1582 = vpack.c.b16 %v1550, %v1550
        %v1583 = vpack.c.b16 %v1551, %v1551
        %v1584 = vpack.c.b16 %v1552, %v1552
        %v1585 = vpack.c.b16 %v1553, %v1553
        %v1586 = vpack.c.b16 %v1554, %v1554
        %v1587 = vpack.c.b16 %v1555, %v1555
        %v1588 = vpack.c.b16 %v1556, %v1556
        %v1589 = vpack.c.b16 %v1557, %v1557
        %v1590 = vpack.c.b16 %v1558, %v1558
        %v1591 = vpack.c.b16 %v1559, %v1559
        %v1592 = vpack.c.b16 %v1560, %v1560
        %v1593 = vpack.c.b16 %v1561, %v1561
        %v1594 = vpack.c.b16 %v1562, %v1562
        %v1595 = vpack.c.b16 %v1563, %v1563
        %v1596 = vpack.c.b16 %v1564, %v1564
        %v1597 = vpack.c.b16 %v1565, %v1565
        %v1598 = vpack.c.b16 %v1566, %v1566
        %v1599 = vpack.c.b16 %v1567, %v1567
        %v1600 = vpack.c.b16 %v1568, %v1568
        %v1601 = vpack.c.b16 %v1569, %v1569
        %1634 = vst [vmem:[%s252] sm:$0xf] %v1570
        %1635 = vst [vmem:[%s252 + $0x4] sm:$0xf] %v1571
        %1636 = vst [vmem:[%s252 + $0x8] sm:$0xf] %v1572
        %1637 = vst [vmem:[%s252 + $0xc] sm:$0xf] %v1573
        %1638 = vst [vmem:[%s252 + $0x10] sm:$0xf] %v1574
        %1639 = vst [vmem:[%s252 + $0x14] sm:$0xf] %v1575
        %1640 = vst [vmem:[%s252 + $0x18] sm:$0xf] %v1576
        %1641 = vst [vmem:[%s252 + $0x1c] sm:$0xf] %v1577
        %1642 = vst [vmem:[%s252 + $0x20] sm:$0xf] %v1578
        %1643 = vst [vmem:[%s252 + $0x24] sm:$0xf] %v1579
        %1644 = vst [vmem:[%s252 + $0x28] sm:$0xf] %v1580
        %1645 = vst [vmem:[%s252 + $0x2c] sm:$0xf] %v1581
        %1646 = vst [vmem:[%s252 + $0x30] sm:$0xf] %v1582
        %1647 = vst [vmem:[%s252 + $0x34] sm:$0xf] %v1583
        %1648 = vst [vmem:[%s252 + $0x38] sm:$0xf] %v1584
        %1649 = vst [vmem:[%s252 + $0x3c] sm:$0xf] %v1585
        %1650 = vst [vmem:[%s252 + $0x40] sm:$0xf] %v1586
        %1651 = vst [vmem:[%s252 + $0x44] sm:$0xf] %v1587
        %1652 = vst [vmem:[%s252 + $0x48] sm:$0xf] %v1588
        %1653 = vst [vmem:[%s252 + $0x4c] sm:$0xf] %v1589
        %1654 = vst [vmem:[%s252 + $0x50] sm:$0xf] %v1590
        %1655 = vst [vmem:[%s252 + $0x54] sm:$0xf] %v1591
        %1656 = vst [vmem:[%s252 + $0x58] sm:$0xf] %v1592
        %1657 = vst [vmem:[%s252 + $0x5c] sm:$0xf] %v1593
        %1658 = vst [vmem:[%s252 + $0x60] sm:$0xf] %v1594
        %1659 = vst [vmem:[%s252 + $0x64] sm:$0xf] %v1595
        %1660 = vst [vmem:[%s252 + $0x68] sm:$0xf] %v1596
        %1661 = vst [vmem:[%s252 + $0x6c] sm:$0xf] %v1597
        %1662 = vst [vmem:[%s252 + $0x70] sm:$0xf] %v1598
        %1663 = vst [vmem:[%s252 + $0x74] sm:$0xf] %v1599
        %1664 = vst [vmem:[%s252 + $0x78] sm:$0xf] %v1600
        %1665 = vst [vmem:[%s252 + $0x7c] sm:$0xf] %v1601
        %s1666 = sand.u32 %s130, 1
        %s1667 = scalar_lea.sflag [#allocation4], %s1666
        %s1668 = sand.u32 %s130, 1
        %s1669 = smul.addr %s1668, 128
        %s1670 = scalar_lea.vmem [#allocation8], %s1669
        // Predicated region
        $region45: #{up_forward.2} parent=31 // pred_check
          %p1671 = pneg %p140
        $region46: #{up_forward.2} parent=31 // pred_check_branch
          %1673 = sbr.rel (%p1671) target = $region48
        $region47: #{up_forward.2} parent=31 // pred_region
          %s1674 = smul.u32 16, %s28
          %s1676 = ssub.s32 2048, 2048
          %1677 = vsyncadd %s1667, %s1676
          %s1678 = smul.addr %s1674, 2
          %s1679 = sadd.s32 %s27, %s1678
          %s1680 = smul.addr %s26, 32
          %s1681 = sadd.s32 %s1679, %s1680
          %s1682 = smul.addr %s1681, 64
          %s1683 = scalar_lea.hbm %s3, %s1682
          %s1684 = sshll.u32 %s1670, 4
          %s1685 = int_to_ptr.vmem [resolvable:$true] %s1684
          %1690 = dma.vmem_to_hbm [thread:$0]  %s1685, 2048, %s1683, %s1667, 64, 64, 4
        $region48: #{up_forward.2} parent=31 // pred_fallthru
          _
      $region32: #{up_forward.2} parent=5 // pred_fallthru
        _
      %p1691 = scmp.le.s32.totalorder 2, %s16
      // Predicated region
      $region49: #{up_forward.2} parent=5 // pred_check
        %p1692 = pneg %p1691
      $region50: #{up_forward.2} parent=5 // pred_check_branch
        %1694 = sbr.rel (%p1692) target = $region52
      $region51: #{up_forward.2} parent=5 // pred_region
        %s1695 = ssub.s32 %s16, 2
        // Predicated region
        $region53: #{up_forward.2} parent=51 // pred_check
          %p1696 = pneg %p146
        $region54: #{up_forward.2} parent=51 // pred_check_branch
          %1698 = sbr.rel (%p1696) target = $region56
        $region55: #{up_forward.2} parent=51 // pred_region
          %s1699 = sand.u32 %s131, 1
          %s1700 = scalar_lea.sflag [#allocation4], %s1699
          %s1701 = sand.u32 %s131, 1
          %s1702 = smul.addr %s1701, 128
          %s1703 = scalar_lea.vmem [#allocation8], %s1702
          %1704 = dma.done %s1700, 2048
        $region56: #{up_forward.2} parent=51 // pred_fallthru
          _
      $region52: #{up_forward.2} parent=5 // pred_fallthru
        _
    $region6: #{up_forward.2} parent=1 // loop_footer
      %s20 = sadd.s32 1, %s16
    $region7: #{up_forward.2} parent=1 // loop_footer_branch
      %15 = sbr.rel target = $region3
    $region8: #{up_forward.2} parent=1 // loop_exit
      _
    %1705 = vsyncpa [#allocation3], 1
    %s1706 = scalar_lea.sflag [#allocation3], 1
    %1707 = vsyncpa %s1706, 1
    %1708 = vsyncpa [#allocation6], 1
    %1709 = vsyncpa [#allocation4], 1
    %s1710 = scalar_lea.sflag [#allocation4], 1
    %1711 = vsyncpa %s1710, 1

// kernel: up_forward.3
$region0: #{up_forward.3}
  #allocation0 [shape = 'u32[]', space=smem, size = 0x4, offset = 0x4, fixed_abs, tag = 'smem constant byte address 0x4 - core index']
  #allocation1 [shape = 'u32[144,128]{1,0:T(1,128)}', space=vmem, size = 0x12000, scoped, tag = 'internal scratch']
  %s0 = inlined_call_operand.hbm [shape: bf16[2,18,18,128], index: 0, kind: input, shape index: {}]
  %s1 = inlined_call_operand.hbm [shape: bf16[36,128], index: 1, kind: input, shape index: {}]
  %s2 = inlined_call_operand.hbm [shape: f32[1,128], index: 2, kind: input, shape index: {}]
  %s3 = inlined_call_operand.hbm [shape: f32[2,16,16,128], index: 3, kind: output, shape index: {}]
  %s4 = sld [smem:[#allocation0]]
  $region57: #{up_forward.3} parent=0
    _
  %s6 = ssub.s32 1, %s4
  %s7 = scalar_select 0, %s6, %s4
  $region1: #{up_forward.3} parent=0
    #allocation2 [shape = 'u8[221184]{0}', space=vmem, size = 0x36000, scoped, tag = 'input window, operand 0']
    #allocation3 [shape = 's32[2]{0}', space=sflag, size = 0x8, scoped, tag = 'scoped memory for up_forward.3']
    #allocation4 [shape = 's32[2]{0}', space=sflag, size = 0x8, scoped, tag = 'scoped memory for up_forward.3']
    #allocation5 [shape = 'u8[10240]{0}', space=vmem, size = 0x2800, scoped, tag = 'input window, operand 1, single buffered']
    #allocation6 [shape = 's32[1]{0}', space=sflag, size = 0x4, scoped, tag = 'scoped memory for up_forward.3']
    #allocation7 [shape = 'u8[512]{0}', space=vmem, size = 0x400, scoped, tag = 'input window, operand 2, single buffered']
    #allocation8 [shape = 'u8[262144]{0}', space=vmem, size = 0x40000, scoped, tag = 'output window, operand 0']
    %8 = vsyncpa [#allocation3], 0
    %s9 = scalar_lea.sflag [#allocation3], 1
    %10 = vsyncpa %s9, 0
    %11 = vsyncpa [#allocation6], 0
    %12 = vsyncpa [#allocation4], 0
    %s13 = scalar_lea.sflag [#allocation4], 1
    %14 = vsyncpa %s13, 0
    loop: start=0, step=1, limit=4
    $region2: #{up_forward.3} parent=1 // loop_pre_header
      _
    $region3: #{up_forward.3} parent=1 // loop_header
      %s16 = sphi 0, %s20
      %p17 = scmp.ge.s32.totalorder %s16, 4
      %s23 = sphi 0, %s42
      %s24 = sphi 0, %s38
      %s25 = sphi 0, %s34
      %s26 = sphi 0, %s23
      %s27 = sphi 0, %s24
      %s28 = sphi 0, %s25
      %s29 = sphi 0, %s26
      %s30 = sphi 0, %s27
      %s31 = sphi 0, %s28
      %s45 = sphi 0, %s47
      %s48 = sphi 0, %s45
      %s49 = sphi 0, %s48
      %s65 = sphi 0, %s49
      %s71 = sphi 0, %s73
      %s74 = sphi 0, %s71
      %s75 = sphi 0, %s74
      %s91 = sphi 0, %s75
      %s97 = sphi 0, %s99
      %s100 = sphi 0, %s97
      %s101 = sphi 0, %s100
      %s117 = sphi 0, %s101
      %s127 = sphi 0, %s129
      %s130 = sphi 0, %s127
      %s131 = sphi 0, %s130
      %s147 = sphi 0, %s131
    $region4: #{up_forward.3} parent=1 // loop_header_branch
      %19 = sbr.rel (%p17) target = $region8
    $region5: #{up_forward.3} parent=1 // loop_body
      %s21 = ssub.s32 %s16, 1
      %s22 = ssub.s32 %s16, 2
      %s32 = sadd.s32 1, %s25
      %p33 = scmp.ge.s32.totalorder %s32, 1
      %s34 = scalar_select %p33, 0, %s32
      %s35 = sadd.s32 1, %s24
      %s36 = scalar_select %p33, %s35, %s24
      %p37 = scmp.ge.s32.totalorder %s36, 1
      %s38 = scalar_select %p37, 0, %s36
      %s39 = sadd.s32 1, %s23
      %s40 = scalar_select %p37, %s39, %s23
      %p41 = scmp.ge.s32.totalorder %s40, 2
      %s42 = scalar_select %p41, 0, %s40
      %s43 = ssub.s32 %s23, %s42
      %p44 = scmp.eq.s32.totalorder %s43, 0
      %s46 = sadd.s32 %s45, 1
      %s47 = scalar_select %p44, %s45, %s46
      %p50 = pneg %p44
      %p51 = scmp.eq.s32.totalorder %s16, 1
      %p52 = por %p50, %p51
      %p53 = scmp.ne.s32.totalorder %s45, %s48
      %p54 = scmp.eq.s32.totalorder %s16, 0
      %p55 = por %p53, %p54
      %p56 = scmp.ne.s32.totalorder %s45, %s48
      %p57 = scmp.eq.s32.totalorder %s21, 1
      %p58 = por %p56, %p57
      %p59 = scmp.ne.s32.totalorder %s48, %s49
      %p60 = scmp.eq.s32.totalorder %s21, 0
      %p61 = por %p59, %p60
      %p62 = scmp.ne.s32.totalorder %s48, %s49
      %p63 = scmp.eq.s32.totalorder %s22, 1
      %p64 = por %p62, %p63
      %p66 = scmp.ne.s32.totalorder %s49, %s65
      %p67 = scmp.eq.s32.totalorder %s22, 0
      %p68 = por %p66, %p67
      %s69 = ssub.s32 %s24, %s38
      %p70 = scmp.eq.s32.totalorder %s69, 0
      %s72 = sadd.s32 %s71, 1
      %s73 = scalar_select %p70, %s71, %s72
      %p76 = pneg %p70
      %p77 = scmp.eq.s32.totalorder %s16, 1
      %p78 = por %p76, %p77
      %p79 = scmp.ne.s32.totalorder %s71, %s74
      %p80 = scmp.eq.s32.totalorder %s16, 0
      %p81 = por %p79, %p80
      %p82 = scmp.ne.s32.totalorder %s71, %s74
      %p83 = scmp.eq.s32.totalorder %s21, 1
      %p84 = por %p82, %p83
      %p85 = scmp.ne.s32.totalorder %s74, %s75
      %p86 = scmp.eq.s32.totalorder %s21, 0
      %p87 = por %p85, %p86
      %p88 = scmp.ne.s32.totalorder %s74, %s75
      %p89 = scmp.eq.s32.totalorder %s22, 1
      %p90 = por %p88, %p89
      %p92 = scmp.ne.s32.totalorder %s75, %s91
      %p93 = scmp.eq.s32.totalorder %s22, 0
      %p94 = por %p92, %p93
      %s95 = ssub.s32 %s24, %s38
      %p96 = scmp.eq.s32.totalorder %s95, 0
      %s98 = sadd.s32 %s97, 1
      %s99 = scalar_select %p96, %s97, %s98
      %p102 = pneg %p96
      %p103 = scmp.eq.s32.totalorder %s16, 1
      %p104 = por %p102, %p103
      %p105 = scmp.ne.s32.totalorder %s97, %s100
      %p106 = scmp.eq.s32.totalorder %s16, 0
      %p107 = por %p105, %p106
      %p108 = scmp.ne.s32.totalorder %s97, %s100
      %p109 = scmp.eq.s32.totalorder %s21, 1
      %p110 = por %p108, %p109
      %p111 = scmp.ne.s32.totalorder %s100, %s101
      %p112 = scmp.eq.s32.totalorder %s21, 0
      %p113 = por %p111, %p112
      %p114 = scmp.ne.s32.totalorder %s100, %s101
      %p115 = scmp.eq.s32.totalorder %s22, 1
      %p116 = por %p114, %p115
      %p118 = scmp.ne.s32.totalorder %s101, %s117
      %p119 = scmp.eq.s32.totalorder %s22, 0
      %p120 = por %p118, %p119
      %s121 = ssub.s32 %s23, %s42
      %s122 = ssub.s32 %s25, %s34
      %s123 = sor.u32 %s121, %s122
      %s124 = ssub.s32 %s24, %s38
      %s125 = sor.u32 %s123, %s124
      %p126 = scmp.eq.s32.totalorder %s125, 0
      %s128 = sadd.s32 %s127, 1
      %s129 = scalar_select %p126, %s127, %s128
      %p132 = pneg %p126
      %p133 = scmp.eq.s32.totalorder %s16, 1
      %p134 = por %p132, %p133
      %p135 = scmp.ne.s32.totalorder %s127, %s130
      %p136 = scmp.eq.s32.totalorder %s16, 0
      %p137 = por %p135, %p136
      %p138 = scmp.ne.s32.totalorder %s127, %s130
      %p139 = scmp.eq.s32.totalorder %s21, 1
      %p140 = por %p138, %p139
      %p141 = scmp.ne.s32.totalorder %s130, %s131
      %p142 = scmp.eq.s32.totalorder %s21, 0
      %p143 = por %p141, %p142
      %p144 = scmp.ne.s32.totalorder %s130, %s131
      %p145 = scmp.eq.s32.totalorder %s22, 1
      %p146 = por %p144, %p145
      %p148 = scmp.ne.s32.totalorder %s131, %s147
      %p149 = scmp.eq.s32.totalorder %s22, 0
      %p150 = por %p148, %p149
      %p151 = scmp.le.s32.totalorder 1, %s16
      %p152 = scmp.lt.s32.totalorder %s16, 3
      %p153 = pnand %p151, %p152
      %p154 = pneg %p153
      // Predicated region
      $region9: #{up_forward.3} parent=5 // pred_check
        _
      $region10: #{up_forward.3} parent=5 // pred_check_branch
        %156 = sbr.rel (%p153) target = $region12
      $region11: #{up_forward.3} parent=5 // pred_region
        %s157 = ssub.s32 %s16, 1
        // Predicated region
        $region13: #{up_forward.3} parent=11 // pred_check
          %p158 = pneg %p87
        $region14: #{up_forward.3} parent=11 // pred_check_branch
          %160 = sbr.rel (%p158) target = $region16
        $region15: #{up_forward.3} parent=11 // pred_region
          %s162 = ssub.s32 320, 320
          %163 = vsyncadd [#allocation6], %s162
          %s164 = smul.addr %s27, 64
          %s165 = scalar_lea.hbm %s1, %s164
          %s166 = sshll.u32 [#allocation5], 4
          %s167 = int_to_ptr.vmem [resolvable:$true] %s166
          %172 = dma.hbm_to_vmem [thread:$0]  %s165, 320, %s167, [#allocation6], 64, 64, 4
        $region16: #{up_forward.3} parent=11 // pred_fallthru
          _
        // Predicated region
        $region17: #{up_forward.3} parent=11 // pred_check
          %p173 = pneg %p113
        $region18: #{up_forward.3} parent=11 // pred_check_branch
          %175 = sbr.rel (%p173) target = $region20
        $region19: #{up_forward.3} parent=11 // pred_region
          %s177 = ssub.s32 16, 16
          %178 = vsyncadd [#allocation6], %s177
          %s179 = smul.addr %s27, 16
          %s180 = scalar_lea.hbm %s2, %s179
          %s182 = sshll.u32 [#allocation7], 4
          %s183 = int_to_ptr.vmem [resolvable:$true] %s182
          %185 = dma.hbm_to_vmem [thread:$0]  %s180, 16, %s183, [#allocation6]
        $region20: #{up_forward.3} parent=11 // pred_fallthru
          _
      $region12: #{up_forward.3} parent=5 // pred_fallthru
        _
      %p186 = scmp.lt.s32.totalorder %s16, 2
      // Predicated region
      $region21: #{up_forward.3} parent=5 // pred_check
        %p187 = pneg %p186
      $region22: #{up_forward.3} parent=5 // pred_check_branch
        %189 = sbr.rel (%p187) target = $region24
      $region23: #{up_forward.3} parent=5 // pred_region
        // Predicated region
        $region25: #{up_forward.3} parent=23 // pred_check
          %p190 = pneg %p55
        $region26: #{up_forward.3} parent=23 // pred_check_branch
          %192 = sbr.rel (%p190) target = $region28
        $region27: #{up_forward.3} parent=23 // pred_region
          %s193 = sand.u32 %s45, 1
          %s194 = scalar_lea.sflag [#allocation3], %s193
          %s195 = sand.u32 %s45, 1
          %s196 = smul.addr %s195, 216
          %s197 = scalar_lea.vmem [#allocation2], %s196
          %s199 = ssub.s32 3456, 3456
          %200 = vsyncadd %s194, %s199
          %s201 = smul.addr %s23, 54
          %s202 = smul.addr %s201, 64
          %s203 = scalar_lea.hbm %s0, %s202
          %s204 = sshll.u32 %s197, 4
          %s205 = int_to_ptr.vmem [resolvable:$true] %s204
          %210 = dma.hbm_to_vmem [thread:$0]  %s203, 3456, %s205, %s194, 64, 64, 4
        $region28: #{up_forward.3} parent=23 // pred_fallthru
          _
      $region24: #{up_forward.3} parent=5 // pred_fallthru
        _
      %p211 = scmp.le.s32.totalorder 1, %s16
      %p212 = scmp.lt.s32.totalorder %s16, 3
      %p213 = pnand %p211, %p212
      %p214 = pneg %p213
      // Predicated region
      $region29: #{up_forward.3} parent=5 // pred_check
        _
      $region30: #{up_forward.3} parent=5 // pred_check_branch
        %216 = sbr.rel (%p213) target = $region32
      $region31: #{up_forward.3} parent=5 // pred_region
        %s217 = ssub.s32 %s16, 1
        %s218 = sand.u32 %s48, 1
        %s219 = scalar_lea.sflag [#allocation3], %s218
        %s220 = sand.u32 %s48, 1
        %s221 = smul.addr %s220, 216
        %s222 = scalar_lea.vmem [#allocation2], %s221
        // Predicated region
        $region33: #{up_forward.3} parent=31 // pred_check
          %p223 = pneg %p61
        $region34: #{up_forward.3} parent=31 // pred_check_branch
          %225 = sbr.rel (%p223) target = $region36
        $region35: #{up_forward.3} parent=31 // pred_region
          %226 = dma.done %s219, 3456
        $region36: #{up_forward.3} parent=31 // pred_fallthru
          _
        // Predicated region
        $region37: #{up_forward.3} parent=31 // pred_check
          %p227 = pneg %p87
        $region38: #{up_forward.3} parent=31 // pred_check_branch
          %229 = sbr.rel (%p227) target = $region40
        $region39: #{up_forward.3} parent=31 // pred_region
          %230 = dma.done [#allocation6], 320
        $region40: #{up_forward.3} parent=31 // pred_fallthru
          _
        // Predicated region
        $region41: #{up_forward.3} parent=31 // pred_check
          %p231 = pneg %p113
        $region42: #{up_forward.3} parent=31 // pred_check_branch
          %233 = sbr.rel (%p231) target = $region44
        $region43: #{up_forward.3} parent=31 // pred_region
          %234 = dma.done [#allocation6], 16
        $region44: #{up_forward.3} parent=31 // pred_fallthru
          _
        %s235 = sand.u32 %s48, 1
        %s236 = scalar_lea.sflag [#allocation3], %s235
        %s237 = sand.u32 %s48, 1
        %s238 = smul.addr %s237, 216
        %s239 = scalar_lea.vmem [#allocation2], %s238
        %p240 = pneg %p61
        %p241 = pneg %p58
        %p242 = pneg %p87
        %p243 = pneg %p84
        %p244 = pneg %p113
        %p245 = pneg %p110
        %p246 = pneg %p143
        %p247 = pneg %p140
        %s248 = sand.u32 %s130, 1
        %s249 = scalar_lea.sflag [#allocation4], %s248
        %s250 = sand.u32 %s130, 1
        %s251 = smul.addr %s250, 256
        %s252 = scalar_lea.vmem [#allocation8], %s251
        %s253 = smul.u32 16, %s28
        %s255 = smul.u32 %s28, 16
        %s256 = smul.u32 %s255, 3
        %s257 = smul.addr %s256, 4
        %s258 = scalar_lea.vmem %s222, %s257 [#allocation2]
        %v259 = vld [vmem:[%s258] sm:$0xf]
        %v260 = vld [vmem:[%s258 + $0x4] sm:$0xf]
        %v261 = vld [vmem:[%s258 + $0x8] sm:$0x1]
        %v262 = vld [vmem:[%s258 + $0xc] sm:$0xf]
        %v263 = vld [vmem:[%s258 + $0x10] sm:$0xf]
        %v264 = vld [vmem:[%s258 + $0x14] sm:$0x1]
        %v265 = vld [vmem:[%s258 + $0x18] sm:$0xf]
        %v266 = vld [vmem:[%s258 + $0x1c] sm:$0xf]
        %v267 = vld [vmem:[%s258 + $0x20] sm:$0x1]
        %v268 = vld [vmem:[%s258 + $0x24] sm:$0xf]
        %v269 = vld [vmem:[%s258 + $0x28] sm:$0xf]
        %v270 = vld [vmem:[%s258 + $0x2c] sm:$0x1]
        %v271 = vld [vmem:[%s258 + $0x30] sm:$0xf]
        %v272 = vld [vmem:[%s258 + $0x34] sm:$0xf]
        %v273 = vld [vmem:[%s258 + $0x38] sm:$0x1]
        %v274 = vld [vmem:[%s258 + $0x3c] sm:$0xf]
        %v275 = vld [vmem:[%s258 + $0x40] sm:$0xf]
        %v276 = vld [vmem:[%s258 + $0x44] sm:$0x1]
        %v277 = vld [vmem:[%s258 + $0x48] sm:$0xf]
        %v278 = vld [vmem:[%s258 + $0x4c] sm:$0xf]
        %v279 = vld [vmem:[%s258 + $0x50] sm:$0x1]
        %v280 = vld [vmem:[%s258 + $0x54] sm:$0xf]
        %v281 = vld [vmem:[%s258 + $0x58] sm:$0xf]
        %v282 = vld [vmem:[%s258 + $0x5c] sm:$0x1]
        %v283 = vld [vmem:[%s258 + $0x60] sm:$0xf]
        %v284 = vld [vmem:[%s258 + $0x64] sm:$0xf]
        %v285 = vld [vmem:[%s258 + $0x68] sm:$0x1]
        %v286 = vld [vmem:[%s258 + $0x6c] sm:$0xf]
        %v287 = vld [vmem:[%s258 + $0x70] sm:$0xf]
        %v288 = vld [vmem:[%s258 + $0x74] sm:$0x1]
        %v289 = vld [vmem:[%s258 + $0x78] sm:$0xf]
        %v290 = vld [vmem:[%s258 + $0x7c] sm:$0xf]
        %v291 = vld [vmem:[%s258 + $0x80] sm:$0x1]
        %v292 = vld [vmem:[%s258 + $0x84] sm:$0xf]
        %v293 = vld [vmem:[%s258 + $0x88] sm:$0xf]
        %v294 = vld [vmem:[%s258 + $0x8c] sm:$0x1]
        %v295 = vld [vmem:[%s258 + $0x90] sm:$0xf]
        %v296 = vld [vmem:[%s258 + $0x94] sm:$0xf]
        %v297 = vld [vmem:[%s258 + $0x98] sm:$0x1]
        %v298 = vld [vmem:[%s258 + $0x9c] sm:$0xf]
        %v299 = vld [vmem:[%s258 + $0xa0] sm:$0xf]
        %v300 = vld [vmem:[%s258 + $0xa4] sm:$0x1]
        %v301 = vld [vmem:[%s258 + $0xa8] sm:$0xf]
        %v302 = vld [vmem:[%s258 + $0xac] sm:$0xf]
        %v303 = vld [vmem:[%s258 + $0xb0] sm:$0x1]
        %v304 = vld [vmem:[%s258 + $0xb4] sm:$0xf]
        %v305 = vld [vmem:[%s258 + $0xb8] sm:$0xf]
        %v306 = vld [vmem:[%s258 + $0xbc] sm:$0x1]
        %v307 = vld [vmem:[%s258 + $0xc0] sm:$0xf]
        %v308 = vld [vmem:[%s258 + $0xc4] sm:$0xf]
        %v309 = vld [vmem:[%s258 + $0xc8] sm:$0x1]
        %v310 = vld [vmem:[%s258 + $0xcc] sm:$0xf]
        %v311 = vld [vmem:[%s258 + $0xd0] sm:$0xf]
        %v312 = vld [vmem:[%s258 + $0xd4] sm:$0x1]
        %v345 = vunpack.c.l.b16 %v259
        %v346 = vunpack.c.l.b16 %v260
        %v347 = vunpack.c.l.b16 %v262
        %v348 = vunpack.c.l.b16 %v263
        %v349 = vunpack.c.l.b16 %v265
        %v350 = vunpack.c.l.b16 %v266
        %v351 = vunpack.c.l.b16 %v268
        %v352 = vunpack.c.l.b16 %v269
        %v353 = vunpack.c.l.b16 %v271
        %v354 = vunpack.c.l.b16 %v272
        %v355 = vunpack.c.l.b16 %v274
        %v356 = vunpack.c.l.b16 %v275
        %v357 = vunpack.c.l.b16 %v277
        %v358 = vunpack.c.l.b16 %v278
        %v359 = vunpack.c.l.b16 %v280
        %v360 = vunpack.c.l.b16 %v281
        %v361 = vunpack.c.l.b16 %v283
        %v362 = vunpack.c.l.b16 %v284
        %v363 = vunpack.c.l.b16 %v286
        %v364 = vunpack.c.l.b16 %v287
        %v365 = vunpack.c.l.b16 %v289
        %v366 = vunpack.c.l.b16 %v290
        %v367 = vunpack.c.l.b16 %v292
        %v368 = vunpack.c.l.b16 %v293
        %v369 = vunpack.c.l.b16 %v295
        %v370 = vunpack.c.l.b16 %v296
        %v371 = vunpack.c.l.b16 %v298
        %v372 = vunpack.c.l.b16 %v299
        %v373 = vunpack.c.l.b16 %v301
        %v374 = vunpack.c.l.b16 %v302
        %v375 = vunpack.c.l.b16 %v304
        %v376 = vunpack.c.l.b16 %v305
        %v377 = vpack.c.b16 %v346, %v345
        %v378 = vpack.c.b16 %v348, %v347
        %v379 = vpack.c.b16 %v350, %v349
        %v380 = vpack.c.b16 %v352, %v351
        %v381 = vpack.c.b16 %v354, %v353
        %v382 = vpack.c.b16 %v356, %v355
        %v383 = vpack.c.b16 %v358, %v357
        %v384 = vpack.c.b16 %v360, %v359
        %v385 = vpack.c.b16 %v362, %v361
        %v386 = vpack.c.b16 %v364, %v363
        %v387 = vpack.c.b16 %v366, %v365
        %v388 = vpack.c.b16 %v368, %v367
        %v389 = vpack.c.b16 %v370, %v369
        %v390 = vpack.c.b16 %v372, %v371
        %v391 = vpack.c.b16 %v374, %v373
        %v392 = vpack.c.b16 %v376, %v375
        %v409 = vunpack.c.l.b16 %v261
        %v410 = vunpack.c.l.b16 %v264
        %v411 = vunpack.c.l.b16 %v267
        %v412 = vunpack.c.l.b16 %v270
        %v413 = vunpack.c.l.b16 %v273
        %v414 = vunpack.c.l.b16 %v276
        %v415 = vunpack.c.l.b16 %v279
        %v416 = vunpack.c.l.b16 %v282
        %v417 = vunpack.c.l.b16 %v285
        %v418 = vunpack.c.l.b16 %v288
        %v419 = vunpack.c.l.b16 %v291
        %v420 = vunpack.c.l.b16 %v294
        %v421 = vunpack.c.l.b16 %v297
        %v422 = vunpack.c.l.b16 %v300
        %v423 = vunpack.c.l.b16 %v303
        %v424 = vunpack.c.l.b16 %v306
        %v425 = vpack.c.b16 %v409, %v409
        %v426 = vpack.c.b16 %v410, %v410
        %v427 = vpack.c.b16 %v411, %v411
        %v428 = vpack.c.b16 %v412, %v412
        %v429 = vpack.c.b16 %v413, %v413
        %v430 = vpack.c.b16 %v414, %v414
        %v431 = vpack.c.b16 %v415, %v415
        %v432 = vpack.c.b16 %v416, %v416
        %v433 = vpack.c.b16 %v417, %v417
        %v434 = vpack.c.b16 %v418, %v418
        %v435 = vpack.c.b16 %v419, %v419
        %v436 = vpack.c.b16 %v420, %v420
        %v437 = vpack.c.b16 %v421, %v421
        %v438 = vpack.c.b16 %v422, %v422
        %v439 = vpack.c.b16 %v423, %v423
        %v440 = vpack.c.b16 %v424, %v424
        %vm441 = vsmask.f32 7424
        %v443 = vshrl.u32 %v377, 16
        %v445 = vshll.u32 %v377, 16
        %v447 = vrot.slane %v445, 1
        %v448 = vor.u32 %v443, %v447
        %v450 = vshll.u32 %v425, 16
        %v452 = vrot.slane %v450, 1
        %v453 = vsel %vm441, %v448, %v452
        %v455 = vshrl.u32 %v378, 16
        %v457 = vshll.u32 %v378, 16
        %v459 = vrot.slane %v457, 1
        %v460 = vor.u32 %v455, %v459
        %v462 = vshll.u32 %v426, 16
        %v464 = vrot.slane %v462, 1
        %v465 = vsel %vm441, %v460, %v464
        %v467 = vshrl.u32 %v379, 16
        %v469 = vshll.u32 %v379, 16
        %v471 = vrot.slane %v469, 1
        %v472 = vor.u32 %v467, %v471
        %v474 = vshll.u32 %v427, 16
        %v476 = vrot.slane %v474, 1
        %v477 = vsel %vm441, %v472, %v476
        %v479 = vshrl.u32 %v380, 16
        %v481 = vshll.u32 %v380, 16
        %v483 = vrot.slane %v481, 1
        %v484 = vor.u32 %v479, %v483
        %v486 = vshll.u32 %v428, 16
        %v488 = vrot.slane %v486, 1
        %v489 = vsel %vm441, %v484, %v488
        %v491 = vshrl.u32 %v381, 16
        %v493 = vshll.u32 %v381, 16
        %v495 = vrot.slane %v493, 1
        %v496 = vor.u32 %v491, %v495
        %v498 = vshll.u32 %v429, 16
        %v500 = vrot.slane %v498, 1
        %v501 = vsel %vm441, %v496, %v500
        %v503 = vshrl.u32 %v382, 16
        %v505 = vshll.u32 %v382, 16
        %v507 = vrot.slane %v505, 1
        %v508 = vor.u32 %v503, %v507
        %v510 = vshll.u32 %v430, 16
        %v512 = vrot.slane %v510, 1
        %v513 = vsel %vm441, %v508, %v512
        %v515 = vshrl.u32 %v383, 16
        %v517 = vshll.u32 %v383, 16
        %v519 = vrot.slane %v517, 1
        %v520 = vor.u32 %v515, %v519
        %v522 = vshll.u32 %v431, 16
        %v524 = vrot.slane %v522, 1
        %v525 = vsel %vm441, %v520, %v524
        %v527 = vshrl.u32 %v384, 16
        %v529 = vshll.u32 %v384, 16
        %v531 = vrot.slane %v529, 1
        %v532 = vor.u32 %v527, %v531
        %v534 = vshll.u32 %v432, 16
        %v536 = vrot.slane %v534, 1
        %v537 = vsel %vm441, %v532, %v536
        %v539 = vshrl.u32 %v385, 16
        %v541 = vshll.u32 %v385, 16
        %v543 = vrot.slane %v541, 1
        %v544 = vor.u32 %v539, %v543
        %v546 = vshll.u32 %v433, 16
        %v548 = vrot.slane %v546, 1
        %v549 = vsel %vm441, %v544, %v548
        %v551 = vshrl.u32 %v386, 16
        %v553 = vshll.u32 %v386, 16
        %v555 = vrot.slane %v553, 1
        %v556 = vor.u32 %v551, %v555
        %v558 = vshll.u32 %v434, 16
        %v560 = vrot.slane %v558, 1
        %v561 = vsel %vm441, %v556, %v560
        %v563 = vshrl.u32 %v387, 16
        %v565 = vshll.u32 %v387, 16
        %v567 = vrot.slane %v565, 1
        %v568 = vor.u32 %v563, %v567
        %v570 = vshll.u32 %v435, 16
        %v572 = vrot.slane %v570, 1
        %v573 = vsel %vm441, %v568, %v572
        %v575 = vshrl.u32 %v388, 16
        %v577 = vshll.u32 %v388, 16
        %v579 = vrot.slane %v577, 1
        %v580 = vor.u32 %v575, %v579
        %v582 = vshll.u32 %v436, 16
        %v584 = vrot.slane %v582, 1
        %v585 = vsel %vm441, %v580, %v584
        %v587 = vshrl.u32 %v389, 16
        %v589 = vshll.u32 %v389, 16
        %v591 = vrot.slane %v589, 1
        %v592 = vor.u32 %v587, %v591
        %v594 = vshll.u32 %v437, 16
        %v596 = vrot.slane %v594, 1
        %v597 = vsel %vm441, %v592, %v596
        %v599 = vshrl.u32 %v390, 16
        %v601 = vshll.u32 %v390, 16
        %v603 = vrot.slane %v601, 1
        %v604 = vor.u32 %v599, %v603
        %v606 = vshll.u32 %v438, 16
        %v608 = vrot.slane %v606, 1
        %v609 = vsel %vm441, %v604, %v608
        %v611 = vshrl.u32 %v391, 16
        %v613 = vshll.u32 %v391, 16
        %v615 = vrot.slane %v613, 1
        %v616 = vor.u32 %v611, %v615
        %v618 = vshll.u32 %v439, 16
        %v620 = vrot.slane %v618, 1
        %v621 = vsel %vm441, %v616, %v620
        %v623 = vshrl.u32 %v392, 16
        %v625 = vshll.u32 %v392, 16
        %v627 = vrot.slane %v625, 1
        %v628 = vor.u32 %v623, %v627
        %v630 = vshll.u32 %v440, 16
        %v632 = vrot.slane %v630, 1
        %v633 = vsel %vm441, %v628, %v632
        %634 = vrot.lane.b32.xlu0 %v453, 4
        %v635 = vpop.permute.xlu0 %634
        %636 = vrot.lane.b32.xlu0 %v465, 4
        %v637 = vpop.permute.xlu0 %636
        %638 = vrot.lane.b32.xlu0 %v477, 4
        %v639 = vpop.permute.xlu0 %638
        %640 = vrot.lane.b32.xlu0 %v489, 4
        %v641 = vpop.permute.xlu0 %640
        %642 = vrot.lane.b32.xlu0 %v501, 4
        %v643 = vpop.permute.xlu0 %642
        %644 = vrot.lane.b32.xlu0 %v513, 4
        %v645 = vpop.permute.xlu0 %644
        %646 = vrot.lane.b32.xlu0 %v525, 4
        %v647 = vpop.permute.xlu0 %646
        %648 = vrot.lane.b32.xlu0 %v537, 4
        %v649 = vpop.permute.xlu0 %648
        %650 = vrot.lane.b32.xlu0 %v549, 4
        %v651 = vpop.permute.xlu0 %650
        %652 = vrot.lane.b32.xlu0 %v561, 4
        %v653 = vpop.permute.xlu0 %652
        %654 = vrot.lane.b32.xlu0 %v573, 4
        %v655 = vpop.permute.xlu0 %654
        %656 = vrot.lane.b32.xlu0 %v585, 4
        %v657 = vpop.permute.xlu0 %656
        %658 = vrot.lane.b32.xlu0 %v597, 4
        %v659 = vpop.permute.xlu0 %658
        %660 = vrot.lane.b32.xlu0 %v609, 4
        %v661 = vpop.permute.xlu0 %660
        %662 = vrot.lane.b32.xlu0 %v621, 4
        %v663 = vpop.permute.xlu0 %662
        %664 = vrot.lane.b32.xlu0 %v633, 4
        %v665 = vpop.permute.xlu0 %664
        %vm666 = vcmask 1046528
        %v667 = vrot.slane %v377, 1
        %v668 = vrot.slane %v425, 1
        %v669 = vsel %vm666, %v667, %v668
        %v670 = vrot.slane %v378, 1
        %v671 = vrot.slane %v426, 1
        %v672 = vsel %vm666, %v670, %v671
        %v673 = vrot.slane %v379, 1
        %v674 = vrot.slane %v427, 1
        %v675 = vsel %vm666, %v673, %v674
        %v676 = vrot.slane %v380, 1
        %v677 = vrot.slane %v428, 1
        %v678 = vsel %vm666, %v676, %v677
        %v679 = vrot.slane %v381, 1
        %v680 = vrot.slane %v429, 1
        %v681 = vsel %vm666, %v679, %v680
        %v682 = vrot.slane %v382, 1
        %v683 = vrot.slane %v430, 1
        %v684 = vsel %vm666, %v682, %v683
        %v685 = vrot.slane %v383, 1
        %v686 = vrot.slane %v431, 1
        %v687 = vsel %vm666, %v685, %v686
        %v688 = vrot.slane %v384, 1
        %v689 = vrot.slane %v432, 1
        %v690 = vsel %vm666, %v688, %v689
        %v691 = vrot.slane %v385, 1
        %v692 = vrot.slane %v433, 1
        %v693 = vsel %vm666, %v691, %v692
        %v694 = vrot.slane %v386, 1
        %v695 = vrot.slane %v434, 1
        %v696 = vsel %vm666, %v694, %v695
        %v697 = vrot.slane %v387, 1
        %v698 = vrot.slane %v435, 1
        %v699 = vsel %vm666, %v697, %v698
        %v700 = vrot.slane %v388, 1
        %v701 = vrot.slane %v436, 1
        %v702 = vsel %vm666, %v700, %v701
        %v703 = vrot.slane %v389, 1
        %v704 = vrot.slane %v437, 1
        %v705 = vsel %vm666, %v703, %v704
        %v706 = vrot.slane %v390, 1
        %v707 = vrot.slane %v438, 1
        %v708 = vsel %vm666, %v706, %v707
        %v709 = vrot.slane %v391, 1
        %v710 = vrot.slane %v439, 1
        %v711 = vsel %vm666, %v709, %v710
        %v712 = vrot.slane %v392, 1
        %v713 = vrot.slane %v440, 1
        %v714 = vsel %vm666, %v712, %v713
        %715 = vrot.lane.b32.xlu0 %v669, 8
        %v716 = vpop.permute.xlu0 %715
        %717 = vrot.lane.b32.xlu0 %v672, 8
        %v718 = vpop.permute.xlu0 %717
        %719 = vrot.lane.b32.xlu0 %v675, 8
        %v720 = vpop.permute.xlu0 %719
        %721 = vrot.lane.b32.xlu0 %v678, 8
        %v722 = vpop.permute.xlu0 %721
        %723 = vrot.lane.b32.xlu0 %v681, 8
        %v724 = vpop.permute.xlu0 %723
        %725 = vrot.lane.b32.xlu0 %v684, 8
        %v726 = vpop.permute.xlu0 %725
        %727 = vrot.lane.b32.xlu0 %v687, 8
        %v728 = vpop.permute.xlu0 %727
        %729 = vrot.lane.b32.xlu0 %v690, 8
        %v730 = vpop.permute.xlu0 %729
        %731 = vrot.lane.b32.xlu0 %v693, 8
        %v732 = vpop.permute.xlu0 %731
        %733 = vrot.lane.b32.xlu0 %v696, 8
        %v734 = vpop.permute.xlu0 %733
        %735 = vrot.lane.b32.xlu0 %v699, 8
        %v736 = vpop.permute.xlu0 %735
        %737 = vrot.lane.b32.xlu0 %v702, 8
        %v738 = vpop.permute.xlu0 %737
        %739 = vrot.lane.b32.xlu0 %v705, 8
        %v740 = vpop.permute.xlu0 %739
        %741 = vrot.lane.b32.xlu0 %v708, 8
        %v742 = vpop.permute.xlu0 %741
        %743 = vrot.lane.b32.xlu0 %v711, 8
        %v744 = vpop.permute.xlu0 %743
        %745 = vrot.lane.b32.xlu0 %v714, 8
        %v746 = vpop.permute.xlu0 %745
        %v749 = vunpack.c.l.b16 %v307
        %v750 = vunpack.c.l.b16 %v308
        %v751 = vpack.c.b16 %v750, %v749
        %752 = vrot.lane.b32.xlu0 %v378, 12
        %v753 = vpop.permute.xlu0 %752
        %754 = vrot.lane.b32.xlu0 %v379, 12
        %v755 = vpop.permute.xlu0 %754
        %756 = vrot.lane.b32.xlu0 %v380, 12
        %v757 = vpop.permute.xlu0 %756
        %758 = vrot.lane.b32.xlu0 %v381, 12
        %v759 = vpop.permute.xlu0 %758
        %760 = vrot.lane.b32.xlu0 %v382, 12
        %v761 = vpop.permute.xlu0 %760
        %762 = vrot.lane.b32.xlu0 %v383, 12
        %v763 = vpop.permute.xlu0 %762
        %764 = vrot.lane.b32.xlu0 %v384, 12
        %v765 = vpop.permute.xlu0 %764
        %766 = vrot.lane.b32.xlu0 %v385, 12
        %v767 = vpop.permute.xlu0 %766
        %768 = vrot.lane.b32.xlu0 %v386, 12
        %v769 = vpop.permute.xlu0 %768
        %770 = vrot.lane.b32.xlu0 %v387, 12
        %v771 = vpop.permute.xlu0 %770
        %772 = vrot.lane.b32.xlu0 %v388, 12
        %v773 = vpop.permute.xlu0 %772
        %774 = vrot.lane.b32.xlu0 %v389, 12
        %v775 = vpop.permute.xlu0 %774
        %776 = vrot.lane.b32.xlu0 %v390, 12
        %v777 = vpop.permute.xlu0 %776
        %778 = vrot.lane.b32.xlu0 %v391, 12
        %v779 = vpop.permute.xlu0 %778
        %780 = vrot.lane.b32.xlu0 %v392, 12
        %v781 = vpop.permute.xlu0 %780
        %782 = vrot.lane.b32.xlu0 %v751, 12
        %v783 = vpop.permute.xlu0 %782
        %v785 = vunpack.c.l.b16 %v309
        %v786 = vpack.c.b16 %v785, %v785
        %v788 = vshrl.u32 %v751, 16
        %v790 = vshll.u32 %v751, 16
        %v792 = vrot.slane %v790, 1
        %v793 = vor.u32 %v788, %v792
        %v795 = vshll.u32 %v786, 16
        %v797 = vrot.slane %v795, 1
        %v798 = vsel %vm441, %v793, %v797
        %799 = vrot.lane.b32.xlu0 %v465, 16
        %v800 = vpop.permute.xlu0 %799
        %801 = vrot.lane.b32.xlu0 %v477, 16
        %v802 = vpop.permute.xlu0 %801
        %803 = vrot.lane.b32.xlu0 %v489, 16
        %v804 = vpop.permute.xlu0 %803
        %805 = vrot.lane.b32.xlu0 %v501, 16
        %v806 = vpop.permute.xlu0 %805
        %807 = vrot.lane.b32.xlu0 %v513, 16
        %v808 = vpop.permute.xlu0 %807
        %809 = vrot.lane.b32.xlu0 %v525, 16
        %v810 = vpop.permute.xlu0 %809
        %811 = vrot.lane.b32.xlu0 %v537, 16
        %v812 = vpop.permute.xlu0 %811
        %813 = vrot.lane.b32.xlu0 %v549, 16
        %v814 = vpop.permute.xlu0 %813
        %815 = vrot.lane.b32.xlu0 %v561, 16
        %v816 = vpop.permute.xlu0 %815
        %817 = vrot.lane.b32.xlu0 %v573, 16
        %v818 = vpop.permute.xlu0 %817
        %819 = vrot.lane.b32.xlu0 %v585, 16
        %v820 = vpop.permute.xlu0 %819
        %821 = vrot.lane.b32.xlu0 %v597, 16
        %v822 = vpop.permute.xlu0 %821
        %823 = vrot.lane.b32.xlu0 %v609, 16
        %v824 = vpop.permute.xlu0 %823
        %825 = vrot.lane.b32.xlu0 %v621, 16
        %v826 = vpop.permute.xlu0 %825
        %827 = vrot.lane.b32.xlu0 %v633, 16
        %v828 = vpop.permute.xlu0 %827
        %829 = vrot.lane.b32.xlu0 %v798, 16
        %v830 = vpop.permute.xlu0 %829
        %v831 = vrot.slane %v751, 1
        %v832 = vrot.slane %v786, 1
        %v833 = vsel %vm666, %v831, %v832
        %834 = vrot.lane.b32.xlu0 %v672, 20
        %v835 = vpop.permute.xlu0 %834
        %836 = vrot.lane.b32.xlu0 %v675, 20
        %v837 = vpop.permute.xlu0 %836
        %838 = vrot.lane.b32.xlu0 %v678, 20
        %v839 = vpop.permute.xlu0 %838
        %840 = vrot.lane.b32.xlu0 %v681, 20
        %v841 = vpop.permute.xlu0 %840
        %842 = vrot.lane.b32.xlu0 %v684, 20
        %v843 = vpop.permute.xlu0 %842
        %844 = vrot.lane.b32.xlu0 %v687, 20
        %v845 = vpop.permute.xlu0 %844
        %846 = vrot.lane.b32.xlu0 %v690, 20
        %v847 = vpop.permute.xlu0 %846
        %848 = vrot.lane.b32.xlu0 %v693, 20
        %v849 = vpop.permute.xlu0 %848
        %850 = vrot.lane.b32.xlu0 %v696, 20
        %v851 = vpop.permute.xlu0 %850
        %852 = vrot.lane.b32.xlu0 %v699, 20
        %v853 = vpop.permute.xlu0 %852
        %854 = vrot.lane.b32.xlu0 %v702, 20
        %v855 = vpop.permute.xlu0 %854
        %856 = vrot.lane.b32.xlu0 %v705, 20
        %v857 = vpop.permute.xlu0 %856
        %858 = vrot.lane.b32.xlu0 %v708, 20
        %v859 = vpop.permute.xlu0 %858
        %860 = vrot.lane.b32.xlu0 %v711, 20
        %v861 = vpop.permute.xlu0 %860
        %862 = vrot.lane.b32.xlu0 %v714, 20
        %v863 = vpop.permute.xlu0 %862
        %864 = vrot.lane.b32.xlu0 %v833, 20
        %v865 = vpop.permute.xlu0 %864
        %v868 = vunpack.c.l.b16 %v310
        %v869 = vunpack.c.l.b16 %v311
        %v870 = vpack.c.b16 %v869, %v868
        %871 = vrot.lane.b32.xlu0 %v379, 24
        %v872 = vpop.permute.xlu0 %871
        %873 = vrot.lane.b32.xlu0 %v380, 24
        %v874 = vpop.permute.xlu0 %873
        %875 = vrot.lane.b32.xlu0 %v381, 24
        %v876 = vpop.permute.xlu0 %875
        %877 = vrot.lane.b32.xlu0 %v382, 24
        %v878 = vpop.permute.xlu0 %877
        %879 = vrot.lane.b32.xlu0 %v383, 24
        %v880 = vpop.permute.xlu0 %879
        %881 = vrot.lane.b32.xlu0 %v384, 24
        %v882 = vpop.permute.xlu0 %881
        %883 = vrot.lane.b32.xlu0 %v385, 24
        %v884 = vpop.permute.xlu0 %883
        %885 = vrot.lane.b32.xlu0 %v386, 24
        %v886 = vpop.permute.xlu0 %885
        %887 = vrot.lane.b32.xlu0 %v387, 24
        %v888 = vpop.permute.xlu0 %887
        %889 = vrot.lane.b32.xlu0 %v388, 24
        %v890 = vpop.permute.xlu0 %889
        %891 = vrot.lane.b32.xlu0 %v389, 24
        %v892 = vpop.permute.xlu0 %891
        %893 = vrot.lane.b32.xlu0 %v390, 24
        %v894 = vpop.permute.xlu0 %893
        %895 = vrot.lane.b32.xlu0 %v391, 24
        %v896 = vpop.permute.xlu0 %895
        %897 = vrot.lane.b32.xlu0 %v392, 24
        %v898 = vpop.permute.xlu0 %897
        %899 = vrot.lane.b32.xlu0 %v751, 24
        %v900 = vpop.permute.xlu0 %899
        %901 = vrot.lane.b32.xlu0 %v870, 24
        %v902 = vpop.permute.xlu0 %901
        %v904 = vunpack.c.l.b16 %v312
        %v905 = vpack.c.b16 %v904, %v904
        %v907 = vshrl.u32 %v870, 16
        %v909 = vshll.u32 %v870, 16
        %v911 = vrot.slane %v909, 1
        %v912 = vor.u32 %v907, %v911
        %v914 = vshll.u32 %v905, 16
        %v916 = vrot.slane %v914, 1
        %v917 = vsel %vm441, %v912, %v916
        %918 = vrot.lane.b32.xlu0 %v477, 28
        %v919 = vpop.permute.xlu0 %918
        %920 = vrot.lane.b32.xlu0 %v489, 28
        %v921 = vpop.permute.xlu0 %920
        %922 = vrot.lane.b32.xlu0 %v501, 28
        %v923 = vpop.permute.xlu0 %922
        %924 = vrot.lane.b32.xlu0 %v513, 28
        %v925 = vpop.permute.xlu0 %924
        %926 = vrot.lane.b32.xlu0 %v525, 28
        %v927 = vpop.permute.xlu0 %926
        %928 = vrot.lane.b32.xlu0 %v537, 28
        %v929 = vpop.permute.xlu0 %928
        %930 = vrot.lane.b32.xlu0 %v549, 28
        %v931 = vpop.permute.xlu0 %930
        %932 = vrot.lane.b32.xlu0 %v561, 28
        %v933 = vpop.permute.xlu0 %932
        %934 = vrot.lane.b32.xlu0 %v573, 28
        %v935 = vpop.permute.xlu0 %934
        %936 = vrot.lane.b32.xlu0 %v585, 28
        %v937 = vpop.permute.xlu0 %936
        %938 = vrot.lane.b32.xlu0 %v597, 28
        %v939 = vpop.permute.xlu0 %938
        %940 = vrot.lane.b32.xlu0 %v609, 28
        %v941 = vpop.permute.xlu0 %940
        %942 = vrot.lane.b32.xlu0 %v621, 28
        %v943 = vpop.permute.xlu0 %942
        %944 = vrot.lane.b32.xlu0 %v633, 28
        %v945 = vpop.permute.xlu0 %944
        %946 = vrot.lane.b32.xlu0 %v798, 28
        %v947 = vpop.permute.xlu0 %946
        %948 = vrot.lane.b32.xlu0 %v917, 28
        %v949 = vpop.permute.xlu0 %948
        %v950 = vrot.slane %v870, 1
        %v951 = vrot.slane %v905, 1
        %v952 = vsel %vm666, %v950, %v951
        %953 = vrot.lane.b32.xlu0 %v675, 32
        %v954 = vpop.permute.xlu0 %953
        %955 = vrot.lane.b32.xlu0 %v678, 32
        %v956 = vpop.permute.xlu0 %955
        %957 = vrot.lane.b32.xlu0 %v681, 32
        %v958 = vpop.permute.xlu0 %957
        %959 = vrot.lane.b32.xlu0 %v684, 32
        %v960 = vpop.permute.xlu0 %959
        %961 = vrot.lane.b32.xlu0 %v687, 32
        %v962 = vpop.permute.xlu0 %961
        %963 = vrot.lane.b32.xlu0 %v690, 32
        %v964 = vpop.permute.xlu0 %963
        %965 = vrot.lane.b32.xlu0 %v693, 32
        %v966 = vpop.permute.xlu0 %965
        %967 = vrot.lane.b32.xlu0 %v696, 32
        %v968 = vpop.permute.xlu0 %967
        %969 = vrot.lane.b32.xlu0 %v699, 32
        %v970 = vpop.permute.xlu0 %969
        %971 = vrot.lane.b32.xlu0 %v702, 32
        %v972 = vpop.permute.xlu0 %971
        %973 = vrot.lane.b32.xlu0 %v705, 32
        %v974 = vpop.permute.xlu0 %973
        %975 = vrot.lane.b32.xlu0 %v708, 32
        %v976 = vpop.permute.xlu0 %975
        %977 = vrot.lane.b32.xlu0 %v711, 32
        %v978 = vpop.permute.xlu0 %977
        %979 = vrot.lane.b32.xlu0 %v714, 32
        %v980 = vpop.permute.xlu0 %979
        %981 = vrot.lane.b32.xlu0 %v833, 32
        %v982 = vpop.permute.xlu0 %981
        %983 = vrot.lane.b32.xlu0 %v952, 32
        %v984 = vpop.permute.xlu0 %983
        %vm985 = vcmask 31744
        %v987 = vsel %vm985, %v377, %v635
        %v989 = vsel %vm985, %v378, %v637
        %v991 = vsel %vm985, %v379, %v639
        %v993 = vsel %vm985, %v380, %v641
        %v995 = vsel %vm985, %v381, %v643
        %v997 = vsel %vm985, %v382, %v645
        %v999 = vsel %vm985, %v383, %v647
        %v1001 = vsel %vm985, %v384, %v649
        %v1003 = vsel %vm985, %v385, %v651
        %v1005 = vsel %vm985, %v386, %v653
        %v1007 = vsel %vm985, %v387, %v655
        %v1009 = vsel %vm985, %v388, %v657
        %v1011 = vsel %vm985, %v389, %v659
        %v1013 = vsel %vm985, %v390, %v661
        %v1015 = vsel %vm985, %v391, %v663
        %v1017 = vsel %vm985, %v392, %v665
        %vm1018 = vcmask 64512
        %v1020 = vsel %vm1018, %v987, %v716
        %v1022 = vsel %vm1018, %v989, %v718
        %v1024 = vsel %vm1018, %v991, %v720
        %v1026 = vsel %vm1018, %v993, %v722
        %v1028 = vsel %vm1018, %v995, %v724
        %v1030 = vsel %vm1018, %v997, %v726
        %v1032 = vsel %vm1018, %v999, %v728
        %v1034 = vsel %vm1018, %v1001, %v730
        %v1036 = vsel %vm1018, %v1003, %v732
        %v1038 = vsel %vm1018, %v1005, %v734
        %v1040 = vsel %vm1018, %v1007, %v736
        %v1042 = vsel %vm1018, %v1009, %v738
        %v1044 = vsel %vm1018, %v1011, %v740
        %v1046 = vsel %vm1018, %v1013, %v742
        %v1048 = vsel %vm1018, %v1015, %v744
        %v1050 = vsel %vm1018, %v1017, %v746
        %vm1051 = vcmask 97280
        %v1053 = vsel %vm1051, %v1020, %v753
        %v1055 = vsel %vm1051, %v1022, %v755
        %v1057 = vsel %vm1051, %v1024, %v757
        %v1059 = vsel %vm1051, %v1026, %v759
        %v1061 = vsel %vm1051, %v1028, %v761
        %v1063 = vsel %vm1051, %v1030, %v763
        %v1065 = vsel %vm1051, %v1032, %v765
        %v1067 = vsel %vm1051, %v1034, %v767
        %v1069 = vsel %vm1051, %v1036, %v769
        %v1071 = vsel %vm1051, %v1038, %v771
        %v1073 = vsel %vm1051, %v1040, %v773
        %v1075 = vsel %vm1051, %v1042, %v775
        %v1077 = vsel %vm1051, %v1044, %v777
        %v1079 = vsel %vm1051, %v1046, %v779
        %v1081 = vsel %vm1051, %v1048, %v781
        %v1083 = vsel %vm1051, %v1050, %v783
        %vm1084 = vcmask 130048
        %v1086 = vsel %vm1084, %v1053, %v800
        %v1088 = vsel %vm1084, %v1055, %v802
        %v1090 = vsel %vm1084, %v1057, %v804
        %v1092 = vsel %vm1084, %v1059, %v806
        %v1094 = vsel %vm1084, %v1061, %v808
        %v1096 = vsel %vm1084, %v1063, %v810
        %v1098 = vsel %vm1084, %v1065, %v812
        %v1100 = vsel %vm1084, %v1067, %v814
        %v1102 = vsel %vm1084, %v1069, %v816
        %v1104 = vsel %vm1084, %v1071, %v818
        %v1106 = vsel %vm1084, %v1073, %v820
        %v1108 = vsel %vm1084, %v1075, %v822
        %v1110 = vsel %vm1084, %v1077, %v824
        %v1112 = vsel %vm1084, %v1079, %v826
        %v1114 = vsel %vm1084, %v1081, %v828
        %v1116 = vsel %vm1084, %v1083, %v830
        %vm1117 = vcmask 162816
        %v1119 = vsel %vm1117, %v1086, %v835
        %v1121 = vsel %vm1117, %v1088, %v837
        %v1123 = vsel %vm1117, %v1090, %v839
        %v1125 = vsel %vm1117, %v1092, %v841
        %v1127 = vsel %vm1117, %v1094, %v843
        %v1129 = vsel %vm1117, %v1096, %v845
        %v1131 = vsel %vm1117, %v1098, %v847
        %v1133 = vsel %vm1117, %v1100, %v849
        %v1135 = vsel %vm1117, %v1102, %v851
        %v1137 = vsel %vm1117, %v1104, %v853
        %v1139 = vsel %vm1117, %v1106, %v855
        %v1141 = vsel %vm1117, %v1108, %v857
        %v1143 = vsel %vm1117, %v1110, %v859
        %v1145 = vsel %vm1117, %v1112, %v861
        %v1147 = vsel %vm1117, %v1114, %v863
        %v1149 = vsel %vm1117, %v1116, %v865
        %vm1150 = vcmask 195584
        %v1152 = vsel %vm1150, %v1119, %v872
        %v1154 = vsel %vm1150, %v1121, %v874
        %v1156 = vsel %vm1150, %v1123, %v876
        %v1158 = vsel %vm1150, %v1125, %v878
        %v1160 = vsel %vm1150, %v1127, %v880
        %v1162 = vsel %vm1150, %v1129, %v882
        %v1164 = vsel %vm1150, %v1131, %v884
        %v1166 = vsel %vm1150, %v1133, %v886
        %v1168 = vsel %vm1150, %v1135, %v888
        %v1170 = vsel %vm1150, %v1137, %v890
        %v1172 = vsel %vm1150, %v1139, %v892
        %v1174 = vsel %vm1150, %v1141, %v894
        %v1176 = vsel %vm1150, %v1143, %v896
        %v1178 = vsel %vm1150, %v1145, %v898
        %v1180 = vsel %vm1150, %v1147, %v900
        %v1182 = vsel %vm1150, %v1149, %v902
        %vm1183 = vcmask 228352
        %v1185 = vsel %vm1183, %v1152, %v919
        %v1187 = vsel %vm1183, %v1154, %v921
        %v1189 = vsel %vm1183, %v1156, %v923
        %v1191 = vsel %vm1183, %v1158, %v925
        %v1193 = vsel %vm1183, %v1160, %v927
        %v1195 = vsel %vm1183, %v1162, %v929
        %v1197 = vsel %vm1183, %v1164, %v931
        %v1199 = vsel %vm1183, %v1166, %v933
        %v1201 = vsel %vm1183, %v1168, %v935
        %v1203 = vsel %vm1183, %v1170, %v937
        %v1205 = vsel %vm1183, %v1172, %v939
        %v1207 = vsel %vm1183, %v1174, %v941
        %v1209 = vsel %vm1183, %v1176, %v943
        %v1211 = vsel %vm1183, %v1178, %v945
        %v1213 = vsel %vm1183, %v1180, %v947
        %v1215 = vsel %vm1183, %v1182, %v949
        %vm1216 = vcmask 261120
        %v1218 = vsel %vm1216, %v1185, %v954
        %v1220 = vsel %vm1216, %v1187, %v956
        %v1222 = vsel %vm1216, %v1189, %v958
        %v1224 = vsel %vm1216, %v1191, %v960
        %v1226 = vsel %vm1216, %v1193, %v962
        %v1228 = vsel %vm1216, %v1195, %v964
        %v1230 = vsel %vm1216, %v1197, %v966
        %v1232 = vsel %vm1216, %v1199, %v968
        %v1234 = vsel %vm1216, %v1201, %v970
        %v1236 = vsel %vm1216, %v1203, %v972
        %v1238 = vsel %vm1216, %v1205, %v974
        %v1240 = vsel %vm1216, %v1207, %v976
        %v1242 = vsel %vm1216, %v1209, %v978
        %v1244 = vsel %vm1216, %v1211, %v980
        %v1246 = vsel %vm1216, %v1213, %v982
        %v1248 = vsel %vm1216, %v1215, %v984
        %v1249 = vld [vmem:[#allocation5] sm:$0xf]
        %v1250 = vld [vmem:[#allocation5 + $0x4] sm:$0xf]
        %v1251 = vld [vmem:[#allocation5 + $0x8] sm:$0xf]
        %v1252 = vld [vmem:[#allocation5 + $0xc] sm:$0xf]
        %v1253 = vld [vmem:[#allocation5 + $0x10] sm:$0x3]
        %v1254 = vld [vmem:[#allocation7] sm:$0x1]
        %v1256 = vlaneseq
        %v1257 = vshrl.u32 %v1256, 7
        %v1258 = vsub.s32 0, %v1257
        %v1259 = vrot.slane %v1254, %v1258
        %v1266 = vunpack.c.l.b16 %v1249
        %v1267 = vunpack.c.l.b16 %v1250
        %v1268 = vunpack.c.l.b16 %v1251
        %v1269 = vunpack.c.l.b16 %v1252
        %v1270 = vunpack.c.l.b16 %v1253
        %v1271 = vpack.c.b16 %v1267, %v1266
        %v1272 = vpack.c.b16 %v1269, %v1268
        %v1273 = vpack.c.b16 %v1270, %v1270
        %vm1276 = vcmask 293888
        %v1277 = vsel %vm1276, %v1218, 0
        %v1279 = vsel %vm1276, %v1220, 0
        %v1281 = vsel %vm1276, %v1222, 0
        %v1283 = vsel %vm1276, %v1224, 0
        %v1285 = vsel %vm1276, %v1226, 0
        %v1287 = vsel %vm1276, %v1228, 0
        %v1289 = vsel %vm1276, %v1230, 0
        %v1291 = vsel %vm1276, %v1232, 0
        %v1293 = vsel %vm1276, %v1234, 0
        %v1295 = vsel %vm1276, %v1236, 0
        %v1297 = vsel %vm1276, %v1238, 0
        %v1299 = vsel %vm1276, %v1240, 0
        %v1301 = vsel %vm1276, %v1242, 0
        %v1303 = vsel %vm1276, %v1244, 0
        %v1305 = vsel %vm1276, %v1246, 0
        %v1307 = vsel %vm1276, %v1248, 0
        %vm1309 = vcmask 1041408
        %v1311 = vsel %vm1309, %v1273, 0
        %1313 = vmatprep.subr.bf16.mxu0 0
        %1314 = vmatpush1.bf16.msra.mxu0 %v1271
        %1315 = vmatprep.subr.bf16.mxu0 0
        %1316 = vmatpush1.bf16.msra.mxu0 %v1272
        %1317 = vmatprep.subr.bf16.mxu0 0
        %1318 = vmatpush1.bf16.msra.mxu0 %v1311
        %1319 = vmatprep.subr.bf16.mxu0 0
        %1320 = vmatpush1.bf16.msra.mxu0 0
        %1321 = vmatprep.subr.bf16.mxu0 0
        %1322 = vmatpush1.bf16.msra.mxu0 0
        %1323 = vmatprep.subr.bf16.mxu0 0
        %1324 = vmatpush1.bf16.msra.mxu0 0
        %1325 = vmatprep.subr.bf16.mxu0 0
        %1326 = vmatpush1.bf16.msra.mxu0 0
        %1327 = vmatprep.subr.bf16.mxu0 0
        %1328 = vmatpush1.bf16.msra.mxu0 0
        %1329 = vmatprep.subr.bf16.mxu0 0
        %1330 = vmatpush1.bf16.msra.mxu0 0
        %1331 = vmatprep.subr.bf16.mxu0 0
        %1332 = vmatpush1.bf16.msra.mxu0 0
        %1333 = vmatprep.subr.bf16.mxu0 0
        %1334 = vmatpush1.bf16.msra.mxu0 0
        %1335 = vmatprep.subr.bf16.mxu0 0
        %1336 = vmatpush1.bf16.msra.mxu0 0
        %1337 = vmatprep.subr.bf16.mxu0 0
        %1338 = vmatpush1.bf16.msra.mxu0 0
        %1339 = vmatprep.subr.bf16.mxu0 0
        %1340 = vmatpush1.bf16.msra.mxu0 0
        %1341 = vmatprep.subr.bf16.mxu0 0
        %1342 = vmatpush1.bf16.msra.mxu0 0
        %1343 = vmatprep.subr.bf16.mxu0 0
        %1344 = vmatpush1.bf16.msra.mxu0 0
        %1345 = vmatprep.mubr.bf16.mxu0 0
        %1346 = vmatmul.mubr.bf16.gmra.mrb[0].mxu0 %v1277
        %v1347 = vpop.f32.mrb[0].mxu0
        %v1348 = vadd.f32 %v1259, %v1347
        %v1349 = vpop.f32.mrb[0].mxu0
        %v1350 = vpop.f32.mrb[0].mxu0
        %v1351 = vadd.f32 %v1259, %v1350
        %v1352 = vpop.f32.mrb[0].mxu0
        %1353 = vmatprep.mubr.bf16.mxu0 0
        %1354 = vmatmul.mubr.bf16.gmra.mrb[0].mxu0 %v1279
        %v1355 = vpop.f32.mrb[0].mxu0
        %v1356 = vadd.f32 %v1259, %v1355
        %v1357 = vpop.f32.mrb[0].mxu0
        %v1358 = vpop.f32.mrb[0].mxu0
        %v1359 = vadd.f32 %v1259, %v1358
        %v1360 = vpop.f32.mrb[0].mxu0
        %1361 = vmatprep.mubr.bf16.mxu0 0
        %1362 = vmatmul.mubr.bf16.gmra.mrb[0].mxu0 %v1281
        %v1363 = vpop.f32.mrb[0].mxu0
        %v1364 = vadd.f32 %v1259, %v1363
        %v1365 = vpop.f32.mrb[0].mxu0
        %v1366 = vpop.f32.mrb[0].mxu0
        %v1367 = vadd.f32 %v1259, %v1366
        %v1368 = vpop.f32.mrb[0].mxu0
        %1369 = vmatprep.mubr.bf16.mxu0 0
        %1370 = vmatmul.mubr.bf16.gmra.mrb[0].mxu0 %v1283
        %v1371 = vpop.f32.mrb[0].mxu0
        %v1372 = vadd.f32 %v1259, %v1371
        %v1373 = vpop.f32.mrb[0].mxu0
        %v1374 = vpop.f32.mrb[0].mxu0
        %v1375 = vadd.f32 %v1259, %v1374
        %v1376 = vpop.f32.mrb[0].mxu0
        %1377 = vmatprep.mubr.bf16.mxu0 0
        %1378 = vmatmul.mubr.bf16.gmra.mrb[0].mxu0 %v1285
        %v1379 = vpop.f32.mrb[0].mxu0
        %v1380 = vadd.f32 %v1259, %v1379
        %v1381 = vpop.f32.mrb[0].mxu0
        %v1382 = vpop.f32.mrb[0].mxu0
        %v1383 = vadd.f32 %v1259, %v1382
        %v1384 = vpop.f32.mrb[0].mxu0
        %1385 = vmatprep.mubr.bf16.mxu0 0
        %1386 = vmatmul.mubr.bf16.gmra.mrb[0].mxu0 %v1287
        %v1387 = vpop.f32.mrb[0].mxu0
        %v1388 = vadd.f32 %v1259, %v1387
        %v1389 = vpop.f32.mrb[0].mxu0
        %v1390 = vpop.f32.mrb[0].mxu0
        %v1391 = vadd.f32 %v1259, %v1390
        %v1392 = vpop.f32.mrb[0].mxu0
        %1393 = vmatprep.mubr.bf16.mxu0 0
        %1394 = vmatmul.mubr.bf16.gmra.mrb[0].mxu0 %v1289
        %v1395 = vpop.f32.mrb[0].mxu0
        %v1396 = vadd.f32 %v1259, %v1395
        %v1397 = vpop.f32.mrb[0].mxu0
        %v1398 = vpop.f32.mrb[0].mxu0
        %v1399 = vadd.f32 %v1259, %v1398
        %v1400 = vpop.f32.mrb[0].mxu0
        %1401 = vmatprep.mubr.bf16.mxu0 0
        %1402 = vmatmul.mubr.bf16.gmra.mrb[0].mxu0 %v1291
        %v1403 = vpop.f32.mrb[0].mxu0
        %v1404 = vadd.f32 %v1259, %v1403
        %v1405 = vpop.f32.mrb[0].mxu0
        %v1406 = vpop.f32.mrb[0].mxu0
        %v1407 = vadd.f32 %v1259, %v1406
        %v1408 = vpop.f32.mrb[0].mxu0
        %1409 = vmatprep.mubr.bf16.mxu0 0
        %1410 = vmatmul.mubr.bf16.gmra.mrb[0].mxu0 %v1293
        %v1411 = vpop.f32.mrb[0].mxu0
        %v1412 = vadd.f32 %v1259, %v1411
        %v1413 = vpop.f32.mrb[0].mxu0
        %v1414 = vpop.f32.mrb[0].mxu0
        %v1415 = vadd.f32 %v1259, %v1414
        %v1416 = vpop.f32.mrb[0].mxu0
        %1417 = vmatprep.mubr.bf16.mxu0 0
        %1418 = vmatmul.mubr.bf16.gmra.mrb[0].mxu0 %v1295
        %v1419 = vpop.f32.mrb[0].mxu0
        %v1420 = vadd.f32 %v1259, %v1419
        %v1421 = vpop.f32.mrb[0].mxu0
        %v1422 = vpop.f32.mrb[0].mxu0
        %v1423 = vadd.f32 %v1259, %v1422
        %v1424 = vpop.f32.mrb[0].mxu0
        %1425 = vmatprep.mubr.bf16.mxu0 0
        %1426 = vmatmul.mubr.bf16.gmra.mrb[0].mxu0 %v1297
        %v1427 = vpop.f32.mrb[0].mxu0
        %v1428 = vadd.f32 %v1259, %v1427
        %v1429 = vpop.f32.mrb[0].mxu0
        %v1430 = vpop.f32.mrb[0].mxu0
        %v1431 = vadd.f32 %v1259, %v1430
        %v1432 = vpop.f32.mrb[0].mxu0
        %1433 = vmatprep.mubr.bf16.mxu0 0
        %1434 = vmatmul.mubr.bf16.gmra.mrb[0].mxu0 %v1299
        %v1435 = vpop.f32.mrb[0].mxu0
        %v1436 = vadd.f32 %v1259, %v1435
        %v1437 = vpop.f32.mrb[0].mxu0
        %v1438 = vpop.f32.mrb[0].mxu0
        %v1439 = vadd.f32 %v1259, %v1438
        %v1440 = vpop.f32.mrb[0].mxu0
        %1441 = vmatprep.mubr.bf16.mxu0 0
        %1442 = vmatmul.mubr.bf16.gmra.mrb[0].mxu0 %v1301
        %v1443 = vpop.f32.mrb[0].mxu0
        %v1444 = vadd.f32 %v1259, %v1443
        %v1445 = vpop.f32.mrb[0].mxu0
        %v1446 = vpop.f32.mrb[0].mxu0
        %v1447 = vadd.f32 %v1259, %v1446
        %v1448 = vpop.f32.mrb[0].mxu0
        %1449 = vmatprep.mubr.bf16.mxu0 0
        %1450 = vmatmul.mubr.bf16.gmra.mrb[0].mxu0 %v1303
        %v1451 = vpop.f32.mrb[0].mxu0
        %v1452 = vadd.f32 %v1259, %v1451
        %v1453 = vpop.f32.mrb[0].mxu0
        %v1454 = vpop.f32.mrb[0].mxu0
        %v1455 = vadd.f32 %v1259, %v1454
        %v1456 = vpop.f32.mrb[0].mxu0
        %1457 = vmatprep.mubr.bf16.mxu0 0
        %1458 = vmatmul.mubr.bf16.gmra.mrb[0].mxu0 %v1305
        %v1459 = vpop.f32.mrb[0].mxu0
        %v1460 = vadd.f32 %v1259, %v1459
        %v1461 = vpop.f32.mrb[0].mxu0
        %v1462 = vpop.f32.mrb[0].mxu0
        %v1463 = vadd.f32 %v1259, %v1462
        %v1464 = vpop.f32.mrb[0].mxu0
        %1465 = vmatprep.mubr.bf16.mxu0 0
        %1466 = vmatmul.mubr.bf16.gmra.mrb[0].mxu0 %v1307
        %v1467 = vpop.f32.mrb[0].mxu0
        %v1468 = vadd.f32 %v1259, %v1467
        %v1469 = vpop.f32.mrb[0].mxu0
        %v1470 = vpop.f32.mrb[0].mxu0
        %v1471 = vadd.f32 %v1259, %v1470
        %v1472 = vpop.f32.mrb[0].mxu0
        %1473 = vdwg.mxu0
        %v1474 = vmax.f32 %v1348, 0.0
        %v1475 = vmax.f32 %v1351, 0.0
        %v1476 = vmax.f32 %v1356, 0.0
        %v1477 = vmax.f32 %v1359, 0.0
        %v1478 = vmax.f32 %v1364, 0.0
        %v1479 = vmax.f32 %v1367, 0.0
        %v1480 = vmax.f32 %v1372, 0.0
        %v1481 = vmax.f32 %v1375, 0.0
        %v1482 = vmax.f32 %v1380, 0.0
        %v1483 = vmax.f32 %v1383, 0.0
        %v1484 = vmax.f32 %v1388, 0.0
        %v1485 = vmax.f32 %v1391, 0.0
        %v1486 = vmax.f32 %v1396, 0.0
        %v1487 = vmax.f32 %v1399, 0.0
        %v1488 = vmax.f32 %v1404, 0.0
        %v1489 = vmax.f32 %v1407, 0.0
        %v1490 = vmax.f32 %v1412, 0.0
        %v1491 = vmax.f32 %v1415, 0.0
        %v1492 = vmax.f32 %v1420, 0.0
        %v1493 = vmax.f32 %v1423, 0.0
        %v1494 = vmax.f32 %v1428, 0.0
        %v1495 = vmax.f32 %v1431, 0.0
        %v1496 = vmax.f32 %v1436, 0.0
        %v1497 = vmax.f32 %v1439, 0.0
        %v1498 = vmax.f32 %v1444, 0.0
        %v1499 = vmax.f32 %v1447, 0.0
        %v1500 = vmax.f32 %v1452, 0.0
        %v1501 = vmax.f32 %v1455, 0.0
        %v1502 = vmax.f32 %v1460, 0.0
        %v1503 = vmax.f32 %v1463, 0.0
        %v1504 = vmax.f32 %v1468, 0.0
        %v1505 = vmax.f32 %v1471, 0.0
        %1506 = vst [vmem:[%s252] sm:$0xff] %v1474
        %1507 = vst [vmem:[%s252 + $0x8] sm:$0xff] %v1475
        %1508 = vst [vmem:[%s252 + $0x10] sm:$0xff] %v1476
        %1509 = vst [vmem:[%s252 + $0x18] sm:$0xff] %v1477
        %1510 = vst [vmem:[%s252 + $0x20] sm:$0xff] %v1478
        %1511 = vst [vmem:[%s252 + $0x28] sm:$0xff] %v1479
        %1512 = vst [vmem:[%s252 + $0x30] sm:$0xff] %v1480
        %1513 = vst [vmem:[%s252 + $0x38] sm:$0xff] %v1481
        %1514 = vst [vmem:[%s252 + $0x40] sm:$0xff] %v1482
        %1515 = vst [vmem:[%s252 + $0x48] sm:$0xff] %v1483
        %1516 = vst [vmem:[%s252 + $0x50] sm:$0xff] %v1484
        %1517 = vst [vmem:[%s252 + $0x58] sm:$0xff] %v1485
        %1518 = vst [vmem:[%s252 + $0x60] sm:$0xff] %v1486
        %1519 = vst [vmem:[%s252 + $0x68] sm:$0xff] %v1487
        %1520 = vst [vmem:[%s252 + $0x70] sm:$0xff] %v1488
        %1521 = vst [vmem:[%s252 + $0x78] sm:$0xff] %v1489
        %1522 = vst [vmem:[%s252 + $0x80] sm:$0xff] %v1490
        %1523 = vst [vmem:[%s252 + $0x88] sm:$0xff] %v1491
        %1524 = vst [vmem:[%s252 + $0x90] sm:$0xff] %v1492
        %1525 = vst [vmem:[%s252 + $0x98] sm:$0xff] %v1493
        %1526 = vst [vmem:[%s252 + $0xa0] sm:$0xff] %v1494
        %1527 = vst [vmem:[%s252 + $0xa8] sm:$0xff] %v1495
        %1528 = vst [vmem:[%s252 + $0xb0] sm:$0xff] %v1496
        %1529 = vst [vmem:[%s252 + $0xb8] sm:$0xff] %v1497
        %1530 = vst [vmem:[%s252 + $0xc0] sm:$0xff] %v1498
        %1531 = vst [vmem:[%s252 + $0xc8] sm:$0xff] %v1499
        %1532 = vst [vmem:[%s252 + $0xd0] sm:$0xff] %v1500
        %1533 = vst [vmem:[%s252 + $0xd8] sm:$0xff] %v1501
        %1534 = vst [vmem:[%s252 + $0xe0] sm:$0xff] %v1502
        %1535 = vst [vmem:[%s252 + $0xe8] sm:$0xff] %v1503
        %1536 = vst [vmem:[%s252 + $0xf0] sm:$0xff] %v1504
        %1537 = vst [vmem:[%s252 + $0xf8] sm:$0xff] %v1505
        %s1538 = sand.u32 %s130, 1
        %s1539 = scalar_lea.sflag [#allocation4], %s1538
        %s1540 = sand.u32 %s130, 1
        %s1541 = smul.addr %s1540, 256
        %s1542 = scalar_lea.vmem [#allocation8], %s1541
        // Predicated region
        $region45: #{up_forward.3} parent=31 // pred_check
          %p1543 = pneg %p140
        $region46: #{up_forward.3} parent=31 // pred_check_branch
          %1545 = sbr.rel (%p1543) target = $region48
        $region47: #{up_forward.3} parent=31 // pred_region
          %s1546 = smul.u32 16, %s28
          %s1548 = ssub.s32 4096, 4096
          %1549 = vsyncadd %s1539, %s1548
          %s1550 = smul.addr %s1546, 2
          %s1551 = sadd.s32 %s27, %s1550
          %s1552 = smul.addr %s26, 32
          %s1553 = sadd.s32 %s1551, %s1552
          %s1554 = smul.addr %s1553, 128
          %s1555 = scalar_lea.hbm %s3, %s1554
          %s1556 = sshll.u32 %s1542, 4
          %s1557 = int_to_ptr.vmem [resolvable:$true] %s1556
          %1562 = dma.vmem_to_hbm [thread:$0]  %s1557, 4096, %s1555, %s1539, 128, 128, 8
        $region48: #{up_forward.3} parent=31 // pred_fallthru
          _
      $region32: #{up_forward.3} parent=5 // pred_fallthru
        _
      %p1563 = scmp.le.s32.totalorder 2, %s16
      // Predicated region
      $region49: #{up_forward.3} parent=5 // pred_check
        %p1564 = pneg %p1563
      $region50: #{up_forward.3} parent=5 // pred_check_branch
        %1566 = sbr.rel (%p1564) target = $region52
      $region51: #{up_forward.3} parent=5 // pred_region
        %s1567 = ssub.s32 %s16, 2
        // Predicated region
        $region53: #{up_forward.3} parent=51 // pred_check
          %p1568 = pneg %p146
        $region54: #{up_forward.3} parent=51 // pred_check_branch
          %1570 = sbr.rel (%p1568) target = $region56
        $region55: #{up_forward.3} parent=51 // pred_region
          %s1571 = sand.u32 %s131, 1
          %s1572 = scalar_lea.sflag [#allocation4], %s1571
          %s1573 = sand.u32 %s131, 1
          %s1574 = smul.addr %s1573, 256
          %s1575 = scalar_lea.vmem [#allocation8], %s1574
          %1576 = dma.done %s1572, 4096
        $region56: #{up_forward.3} parent=51 // pred_fallthru
          _
      $region52: #{up_forward.3} parent=5 // pred_fallthru
        _
    $region6: #{up_forward.3} parent=1 // loop_footer
      %s20 = sadd.s32 1, %s16
    $region7: #{up_forward.3} parent=1 // loop_footer_branch
      %15 = sbr.rel target = $region3
    $region8: #{up_forward.3} parent=1 // loop_exit
      _
    %1577 = vsyncpa [#allocation3], 1
    %s1578 = scalar_lea.sflag [#allocation3], 1
    %1579 = vsyncpa %s1578, 1
    %1580 = vsyncpa [#allocation6], 1
    %1581 = vsyncpa [#allocation4], 1
    %s1582 = scalar_lea.sflag [#allocation4], 1
    %1583 = vsyncpa %s1582, 1

</llo_original>
